<compile_context>
chip_gen: v5e
topology: v5e:2x2
jax: 0.10.0
libtpu: 0.0.40
codegen_flags: <defaults>
</compile_context>

<pallas_src>
import functools

import jax
import jax.numpy as jnp
from jax import lax
from jax.experimental import pallas as pl
from jax.experimental.pallas import tpu as pltpu

BN_EPS = 1e-5
NCORES = 2   # leading parallel axis for pass 1 (v7x: 2 TCs; harmless on 1-TC chips)


# ------------------------------ helpers ------------------------------------- #
def _cdiv(a, b):
    return (a + b - 1) // b


def _round_up(x, m):
    return _cdiv(x, m) * m


def _vmem_budget_bytes():
    """Generation-aware scoped-VMEM budget.  Fallback is safe on every
    generation (v7x has only 64 MiB physical VMEM -> 48 MiB scoped)."""
    phys = 64 * 1024 * 1024
    try:
        info = pltpu.get_tpu_info()
        for name in ("vmem_capacity_bytes", "vmem_size_bytes", "vmem_bytes"):
            v = getattr(info, name, None)
            if v:
                phys = int(v)
                break
    except Exception:
        pass
    return min(phys * 3 // 4, 96 * 1024 * 1024)


def _pick_tiles(m_phase, k_sub, pc, vmem_budget):
    """Separate M-tile sizes for the stats pass and the apply pass."""
    m_up = _round_up(m_phase, 128)
    tile_budget = vmem_budget // 2          # plenty of pipelining headroom

    # pass 1 per-M-column bytes: dbuf bf16 A tile + masked-A copy + two
    # (PC, TM) f32 temporaries (conv, conv^2).  No big output tile.
    per_col1 = 2 * (k_sub * 2) + (k_sub * 2) + 2 * (pc * 4)
    tm1 = tile_budget // per_col1
    tm1 = max(128, min(32 * 1024, (tm1 // 128) * 128))
    tm1 = min(tm1, m_up)

    # pass 2 per-M-column bytes: dbuf bf16 A tile + dbuf bf16 out tile +
    # (PC, TM) f32 temporaries.
    per_col2 = 2 * (k_sub * 2) + 2 * (pc * 2) + 2 * (pc * 4)
    tm2 = tile_budget // per_col2
    tm2 = max(128, min(16 * 1024, (tm2 // 128) * 128))
    # guarantee >= 2 tiles whenever M allows so the "parallel" axis splits on v7x.
    tm2 = min(tm2, max(128, _round_up(_cdiv(m_up, 2), 128)))
    tm2 = min(tm2, m_up)
    return tm1, tm2


# ------------------------------ Pallas kernels ------------------------------ #
def _stats_kernel(a_ref, w_ref, psum_ref, pssq_ref, *, tm, tiles_per_core, m_valid):
    """Pass 1: per-core partial per-(phase, channel) sum / sum-of-squares."""
    i = pl.program_id(1)

    @pl.when(i == 0)
    def _():
        psum_ref[...] = jnp.zeros_like(psum_ref)
        pssq_ref[...] = jnp.zeros_like(pssq_ref)

    # Logical (unclamped) tile id; ragged / out-of-range columns are masked so
    # no physical padding of A^T is ever materialized in HBM.
    tile = pl.program_id(0) * tiles_per_core + i
    col = tile * tm + lax.broadcasted_iota(jnp.int32, (1, tm), 1)
    a = jnp.where(col < m_valid, a_ref[...], 0)

    # (PC, K) @ (K, TM) -> (PC, TM); bf16 operands, f32 MXU accumulation.
    conv = jnp.dot(w_ref[...], a, preferred_element_type=jnp.float32)
    # Lane-axis reductions (XLU); per-core accumulator stays VMEM-resident.
    psum_ref[...] += jnp.sum(conv, axis=1, keepdims=True)[None]
    pssq_ref[...] += jnp.sum(conv * conv, axis=1, keepdims=True)[None]


def _apply_kernel(a_ref, w_ref, scale_ref, shift_ref, o_ref):
    """Pass 2: recompute the cheap matmul, fused BN scale/shift + ReLU.
    Compute in f32; cast to bf16 only on the (lane-dense) store."""
    conv = jnp.dot(w_ref[...], a_ref[...], preferred_element_type=jnp.float32)
    y = jnp.maximum(conv * scale_ref[...] + shift_ref[...], 0.0)
    o_ref[...] = y.astype(o_ref.dtype)


# ------------------------------ forward -------------------------------------- #
@functools.partial(jax.jit, static_argnums=5)
def generator_block_forward(x, w_pt, bias, gamma, beta, stride):
    """x: (N, Cin, D, H, W); w_pt: (Cin, Cout, k, k, k) (PyTorch ConvTranspose3d layout).

    `bias` (ConvTranspose3d.bias) is accepted for interface parity but is a
    mathematical no-op: training-mode BatchNorm subtracts the per-channel mean,
    which cancels the bias exactly.
    """
    del bias
    N, Cin, D, H, W = x.shape
    _, Cout, kD, kH, kW = w_pt.shape
    s = int(stride)
    if kD != kH or kD != kW or (kD % s) != 0:
        # TODO(synk): k % stride != 0 gives per-phase-varying tap counts/extents;
        # only the common divisible case is implemented here.
        raise NotImplementedError("kernel_filter must be cubic and divisible by stride")
    k = kD
    J = k // s                      # taps per axis per output phase
    P = s ** 3                      # number of output phases
    PC = P * Cout
    Qd, Qh, Qw = D + J - 1, H + J - 1, W + J - 1
    K_sub = (J ** 3) * Cin
    M_phase = N * Qd * Qh * Qw      # output voxels per phase

    # ---- shared sub-pixel im2col, transposed (K on sublanes, M on lanes), bf16 ----
    # TODO(synk): for large inputs the tap extraction could move inside the kernel
    # (halo'd DMA from x) so A^T is never materialized in HBM at all.
    x_bf = x.astype(jnp.bfloat16)
    x_pad = jnp.pad(x_bf, ((0, 0), (0, 0),
                           (J - 1, J - 1), (J - 1, J - 1), (J - 1, J - 1)))
    taps = []
    for jd in range(J):
        for jh in range(J):
            for jw in range(J):
                taps.append(x_pad[:, :, jd:jd + Qd, jh:jh + Qh, jw:jw + Qw])
    a_t = jnp.stack(taps, axis=0)                    # (J^3, N, Cin, Qd, Qh, Qw)
    a_t = a_t.transpose(0, 2, 1, 3, 4, 5)            # (J^3, Cin, N, Qd, Qh, Qw)
    a_t = a_t.reshape(K_sub, M_phase)                # no M-padding copy

    # ---- per-phase weight sub-matrices stacked along the output-row axis ----
    # row = phase*Cout + co (phase = ((r_d*s)+r_h)*s + r_w), col = tap*Cin + ci
    w_r = w_pt.reshape(Cin, Cout, J, s, J, s, J, s)
    w_f = jnp.flip(w_r, axis=(2, 4, 6))
    w_all_t = w_f.transpose(3, 5, 7, 1, 2, 4, 6, 0).reshape(PC, K_sub)
    w_all_t = w_all_t.astype(jnp.bfloat16)

    # ---- generation-aware tiling over M (lane axis) ----
    vmem_budget = _vmem_budget_bytes()
    TM1, TM2 = _pick_tiles(M_phase, K_sub, PC, vmem_budget)
    n_tiles1 = _cdiv(M_phase, TM1)
    tiles_per_core = _cdiv(n_tiles1, NCORES)
    n_tiles2 = _cdiv(M_phase, TM2)

    cparams1 = pltpu.CompilerParams(
        dimension_semantics=("parallel", "arbitrary"), vmem_limit_bytes=vmem_budget)
    cparams2 = pltpu.CompilerParams(
        dimension_semantics=("parallel",), vmem_limit_bytes=vmem_budget)

    # -------- pass 1: per-core partial per-(phase, channel) sum / sum-sq --------
    # A index is clamped to the last valid tile; the kernel's lane mask (computed
    # from the UNclamped logical tile id) zeroes any duplicated / ragged columns.
    a_map1 = lambda c, i: (0, jnp.minimum(c * tiles_per_core + i, n_tiles1 - 1))
    psum, pssq = pl.pallas_call(
        functools.partial(_stats_kernel, tm=TM1,
                          tiles_per_core=tiles_per_core, m_valid=M_phase),
        out_shape=(jax.ShapeDtypeStruct((NCORES, PC, 1), jnp.float32),
                   jax.ShapeDtypeStruct((NCORES, PC, 1), jnp.float32)),
        grid_spec=pltpu.PrefetchScalarGridSpec(
            num_scalar_prefetch=0,
            grid=(NCORES, tiles_per_core),
            in_specs=[pl.BlockSpec((K_sub, TM1), a_map1),
                      pl.BlockSpec((PC, K_sub), lambda c, i: (0, 0))],
            out_specs=[pl.BlockSpec((1, PC, 1), lambda c, i: (c, 0, 0)),
                       pl.BlockSpec((1, PC, 1), lambda c, i: (c, 0, 0))]),
        compiler_params=cparams1,
    )(a_t, w_all_t)

    # -------- fold BN (training stats, biased var) + affine into scale/shift ----
    cnt = jnp.float32(P * M_phase)                   # true N*Do*Ho*Wo voxel count
    ch_sum = jnp.sum(psum.reshape(NCORES, P, Cout), axis=(0, 1))
    ch_ssq = jnp.sum(pssq.reshape(NCORES, P, Cout), axis=(0, 1))
    mean = ch_sum / cnt
    var = jnp.maximum(ch_ssq / cnt - mean * mean, 0.0)
    scale = gamma * lax.rsqrt(var + BN_EPS)
    shift = beta - mean * scale
    scale_pc = jnp.tile(scale, P).reshape(PC, 1).astype(jnp.float32)
    shift_pc = jnp.tile(shift, P).reshape(PC, 1).astype(jnp.float32)

    # -------- pass 2: matmul + fused normalize/affine/ReLU, bf16 lane-dense out ----
    # Ragged boundary columns are dropped by Pallas' masked boundary writeback.
    out_t = pl.pallas_call(
        _apply_kernel,
        out_shape=jax.ShapeDtypeStruct((PC, M_phase), jnp.bfloat16),
        grid_spec=pltpu.PrefetchScalarGridSpec(
            num_scalar_prefetch=0,
            grid=(n_tiles2,),
            in_specs=[pl.BlockSpec((K_sub, TM2), lambda i: (0, i)),
                      pl.BlockSpec((PC, K_sub), lambda i: (0, 0)),
                      pl.BlockSpec((PC, 1), lambda i: (0, 0)),
                      pl.BlockSpec((PC, 1), lambda i: (0, 0))],
            out_specs=pl.BlockSpec((PC, TM2), lambda i: (0, i))),
        compiler_params=cparams2,
    )(a_t, w_all_t, scale_pc, shift_pc)

    # -------- pixel-shuffle the phase-major (P*Cout, M) result back to NCDHW ----
    # (done in bf16 to halve the transpose read traffic; converted back to f32
    #  on the final write, which XLA fuses into the transpose/copy)
    o = out_t.reshape(s, s, s, Cout, N, Qd, Qh, Qw)
    o = o.transpose(4, 3, 5, 0, 6, 1, 7, 2)          # (N, Cout, Qd, s, Qh, s, Qw, s)
    return o.astype(jnp.float32).reshape(N, Cout, Qd * s, Qh * s, Qw * s)


# -------------------------- pure-JAX reference ------------------------------- #
def reference_forward(x, w_pt, bias, gamma, beta, stride):
    Cin, Cout, kD, kH, kW = w_pt.shape
    rhs = jnp.transpose(jnp.flip(w_pt, axis=(2, 3, 4)), (1, 0, 2, 3, 4))  # OIDHW
    conv = lax.conv_general_dilated(
        x, rhs, window_strides=(1, 1, 1),
        padding=((kD - 1, kD - 1), (kH - 1, kH - 1), (kW - 1, kW - 1)),
        lhs_dilation=(stride, stride, stride),
        dimension_numbers=('NCDHW', 'OIDHW', 'NCDHW'),
        precision=lax.Precision.HIGHEST)
    conv = conv + bias.reshape(1, Cout, 1, 1, 1)
    mean = jnp.mean(conv, axis=(0, 2, 3, 4), keepdims=True)
    var = jnp.mean((conv - mean) ** 2, axis=(0, 2, 3, 4), keepdims=True)
    y = (conv - mean) * lax.rsqrt(var + BN_EPS)
    y = y * gamma.reshape(1, Cout, 1, 1, 1) + beta.reshape(1, Cout, 1, 1, 1)
    return jnp.maximum(y, 0.0)


# ---------------------------------- main -------------------------------------- #
if __name__ == "__main__":
    # GeneratorBlock(inp_dim=4, out_dim=8, kernel_filter=4, stride=2)
    inp_dim, out_dim, kernel_filter, stride = 4, 8, 4, 2
    N, D, H, W = 2, 4, 4, 4

    key = jax.random.PRNGKey(0)
    kx, kw, kb, kg, kbt = jax.random.split(key, 5)
    x = jax.random.normal(kx, (N, inp_dim, D, H, W), jnp.float32)
    w_pt = 0.1 * jax.random.normal(
        kw, (inp_dim, out_dim, kernel_filter, kernel_filter, kernel_filter),
        jnp.float32)                                          # ConvTranspose3d.weight
    bias = 0.1 * jax.random.normal(kb, (out_dim,), jnp.float32)      # ConvTranspose3d.bias
    gamma = 1.0 + 0.1 * jax.random.normal(kg, (out_dim,), jnp.float32)   # BN.weight
    beta = 0.1 * jax.random.normal(kbt, (out_dim,), jnp.float32)         # BN.bias
    # TODO(synk): BatchNorm3d running_mean/running_var momentum buffer updates are a
    # training-time side effect that does not change this forward output; not emitted.

    out = jax.block_until_ready(
        generator_block_forward(x, w_pt, bias, gamma, beta, stride))

    Do = (D - 1) * stride + kernel_filter
    assert out.shape == (N, out_dim, Do, Do, Do), out.shape

    ref = reference_forward(x, w_pt, bias, gamma, beta, stride)
    max_err = float(jnp.max(jnp.abs(out - ref)))
    # bf16 MXU operands + bf16 output store vs an f32/HIGHEST-precision reference.
    assert max_err < 5e-2, max_err

    print("KERNEL_OK")
</pallas_src>

<mosaic_0001>
module attributes {stable_mosaic.version = 11 : i64} {
  func.func @_stats_kernel(%arg0: i32, %arg1: i32, %arg2: memref<32x256xbf16, #tpu.memory_space<vmem>>, %arg3: memref<64x32xbf16, #tpu.memory_space<vmem>>, %arg4: memref<1x64x1xf32, #tpu.memory_space<vmem>>, %arg5: memref<1x64x1xf32, #tpu.memory_space<vmem>>) attributes {dimension_semantics = [#tpu.dimension_semantics<parallel>, #tpu.dimension_semantics<arbitrary>], iteration_bounds = array<i64: 2, 1>, scalar_prefetch = 0 : i64, scratch_operands = 0 : i64, tpu.core_type = #tpu.core_type<tc>, window_params = [{transform_indices = @transform_0, window_bounds = array<i64: 32, 256>}, {pipeline_mode = #tpu.pipeline_mode<synchronous>, transform_indices = @transform_1, window_bounds = array<i64: 64, 32>}, {transform_indices = @transform_2, window_bounds = array<i64: 1, 64, 1>}, {transform_indices = @transform_3, window_bounds = array<i64: 1, 64, 1>}]} {
    %c0_i32 = arith.constant 0 : i32
    %0 = arith.cmpi eq, %arg1, %c0_i32 : i32
    %1 = arith.extui %0 : i1 to i32
    %c0_i32_0 = arith.constant 0 : i32
    %2 = arith.cmpi ne, %1, %c0_i32_0 : i32
    scf.if %2 {
      %cst_19 = arith.constant 0.000000e+00 : f32
      %32 = vector.broadcast %cst_19 : f32 to vector<1x64x1xf32>
      %c0_20 = arith.constant 0 : index
      %c0_21 = arith.constant 0 : index
      %c0_22 = arith.constant 0 : index
      %33 = vector.load %arg4[%c0_20, %c0_21, %c0_22] : memref<1x64x1xf32, #tpu.memory_space<vmem>>, vector<1x64x1xf32>
      tpu.vector_store %arg4[%c0_20, %c0_21, %c0_22], %32 {strides = array<i32>} : memref<1x64x1xf32, #tpu.memory_space<vmem>>, vector<1x64x1xf32>,
      %cst_23 = arith.constant 0.000000e+00 : f32
      %34 = vector.broadcast %cst_23 : f32 to vector<1x64x1xf32>
      %c0_24 = arith.constant 0 : index
      %c0_25 = arith.constant 0 : index
      %c0_26 = arith.constant 0 : index
      %35 = vector.load %arg5[%c0_24, %c0_25, %c0_26] : memref<1x64x1xf32, #tpu.memory_space<vmem>>, vector<1x64x1xf32>
      tpu.vector_store %arg5[%c0_24, %c0_25, %c0_26], %34 {strides = array<i32>} : memref<1x64x1xf32, #tpu.memory_space<vmem>>, vector<1x64x1xf32>,
    } else {
    }
    %c1_i32 = arith.constant 1 : i32
    %3 = arith.muli %arg0, %c1_i32 : i32
    %4 = arith.addi %3, %arg1 : i32
    %c256_i32 = arith.constant 256 : i32
    %5 = arith.muli %4, %c256_i32 : i32
    %6 = tpu.iota {dimensions = array<i32: 1>} : vector<1x256xi32>
    %7 = vector.broadcast %5 : i32 to vector<1x256xi32>
    %8 = arith.addi %7, %6 : vector<1x256xi32>
    %c250_i32 = arith.constant 250 : i32
    %9 = vector.broadcast %c250_i32 : i32 to vector<1x256xi32>
    %10 = arith.cmpi slt, %8, %9 : vector<1x256xi32>
    %c0 = arith.constant 0 : index
    %c0_1 = arith.constant 0 : index
    %11 = vector.load %arg2[%c0, %c0_1] : memref<32x256xbf16, #tpu.memory_space<vmem>>, vector<32x256xbf16>
    %c0_i32_2 = arith.constant 0 : i32
    %12 = arith.sitofp %c0_i32_2 : i32 to bf16
    %13 = vector.shape_cast %10 : vector<1x256xi1> to vector<1x256xi1>
    %14 = vector.broadcast %13 : vector<1x256xi1> to vector<32x256xi1>
    %15 = vector.broadcast %12 : bf16 to vector<32x256xbf16>
    %16 = arith.select %14, %11, %15 : vector<32x256xi1>, vector<32x256xbf16>
    %c0_3 = arith.constant 0 : index
    %c0_4 = arith.constant 0 : index
    %17 = vector.load %arg3[%c0_3, %c0_4] : memref<64x32xbf16, #tpu.memory_space<vmem>>, vector<64x32xbf16>
    %cst = arith.constant dense<0.000000e+00> : vector<64x256xf32>
    %18 = tpu.matmul %17, %16, %cst {dimension_numbers = #tpu.dot_dimension_numbers<[1], [0], [0], [1], [0, 0, 1, 1], [], []>} : vector<64x32xbf16>, vector<32x256xbf16>, vector<64x256xf32> -> vector<64x256xf32>
    %c0_5 = arith.constant 0 : index
    %c0_6 = arith.constant 0 : index
    %c0_7 = arith.constant 0 : index
    %19 = vector.load %arg4[%c0_5, %c0_6, %c0_7] : memref<1x64x1xf32, #tpu.memory_space<vmem>>, vector<1x64x1xf32>
    %cst_8 = arith.constant dense<0.000000e+00> : vector<64xf32>
    %20 = vector.multi_reduction <add>, %18, %cst_8 [1] : vector<64x256xf32> to vector<64xf32>
    %21 = vector.shape_cast %20 : vector<64xf32> to vector<64x1xf32>
    %22 = vector.shape_cast %21 : vector<64x1xf32> to vector<1x64x1xf32>
    %23 = arith.addf %19, %22 : vector<1x64x1xf32>
    %c0_9 = arith.constant 0 : index
    %c0_10 = arith.constant 0 : index
    %c0_11 = arith.constant 0 : index
    %24 = vector.load %arg4[%c0_9, %c0_10, %c0_11] : memref<1x64x1xf32, #tpu.memory_space<vmem>>, vector<1x64x1xf32>
    tpu.vector_store %arg4[%c0_9, %c0_10, %c0_11], %23 {strides = array<i32>} : memref<1x64x1xf32, #tpu.memory_space<vmem>>, vector<1x64x1xf32>,
    %c0_12 = arith.constant 0 : index
    %c0_13 = arith.constant 0 : index
    %c0_14 = arith.constant 0 : index
    %25 = vector.load %arg5[%c0_12, %c0_13, %c0_14] : memref<1x64x1xf32, #tpu.memory_space<vmem>>, vector<1x64x1xf32>
    %26 = arith.mulf %18, %18 : vector<64x256xf32>
    %cst_15 = arith.constant dense<0.000000e+00> : vector<64xf32>
    %27 = vector.multi_reduction <add>, %26, %cst_15 [1] : vector<64x256xf32> to vector<64xf32>
    %28 = vector.shape_cast %27 : vector<64xf32> to vector<64x1xf32>
    %29 = vector.shape_cast %28 : vector<64x1xf32> to vector<1x64x1xf32>
    %30 = arith.addf %25, %29 : vector<1x64x1xf32>
    %c0_16 = arith.constant 0 : index
    %c0_17 = arith.constant 0 : index
    %c0_18 = arith.constant 0 : index
    %31 = vector.load %arg5[%c0_16, %c0_17, %c0_18] : memref<1x64x1xf32, #tpu.memory_space<vmem>>, vector<1x64x1xf32>
    tpu.vector_store %arg5[%c0_16, %c0_17, %c0_18], %30 {strides = array<i32>} : memref<1x64x1xf32, #tpu.memory_space<vmem>>, vector<1x64x1xf32>,
    return
  }
  func.func @transform_0(%arg0: i32, %arg1: i32) -> (i32, i32) {
    %c1_i32 = arith.constant 1 : i32
    %0 = arith.muli %arg0, %c1_i32 : i32
    %1 = arith.addi %0, %arg1 : i32
    %c0_i32 = arith.constant 0 : i32
    %2 = arith.minsi %1, %c0_i32 : i32
    %c0_i32_0 = arith.constant 0 : i32
    %c0_i32_1 = arith.constant 0 : i32
    return %c0_i32_0, %2 : i32, i32
  }
  func.func @transform_1(%arg0: i32, %arg1: i32) -> (i32, i32) {
    %c0_i32 = arith.constant 0 : i32
    %c0_i32_0 = arith.constant 0 : i32
    %c0_i32_1 = arith.constant 0 : i32
    return %c0_i32, %c0_i32_0 : i32, i32
  }
  func.func @transform_2(%arg0: i32, %arg1: i32) -> (i32, i32, i32) {
    %c0_i32 = arith.constant 0 : i32
    %c0_i32_0 = arith.constant 0 : i32
    %c0_i32_1 = arith.constant 0 : i32
    return %arg0, %c0_i32, %c0_i32_0 : i32, i32, i32
  }
  func.func @transform_3(%arg0: i32, %arg1: i32) -> (i32, i32, i32) {
    %c0_i32 = arith.constant 0 : i32
    %c0_i32_0 = arith.constant 0 : i32
    %c0_i32_1 = arith.constant 0 : i32
    return %arg0, %c0_i32, %c0_i32_0 : i32, i32, i32
  }
}

module attributes {stable_mosaic.version = 11 : i64} {
  func.func @_apply_kernel(%arg0: i32, %arg1: memref<32x128xbf16, #tpu.memory_space<vmem>>, %arg2: memref<64x32xbf16, #tpu.memory_space<vmem>>, %arg3: memref<64x1xf32, #tpu.memory_space<vmem>>, %arg4: memref<64x1xf32, #tpu.memory_space<vmem>>, %arg5: memref<64x128xbf16, #tpu.memory_space<vmem>>) attributes {dimension_semantics = [#tpu.dimension_semantics<parallel>], iteration_bounds = array<i64: 2>, scalar_prefetch = 0 : i64, scratch_operands = 0 : i64, tpu.core_type = #tpu.core_type<tc>, window_params = [{transform_indices = @transform_0, window_bounds = array<i64: 32, 128>}, {pipeline_mode = #tpu.pipeline_mode<synchronous>, transform_indices = @transform_1, window_bounds = array<i64: 64, 32>}, {pipeline_mode = #tpu.pipeline_mode<synchronous>, transform_indices = @transform_2, window_bounds = array<i64: 64, 1>}, {pipeline_mode = #tpu.pipeline_mode<synchronous>, transform_indices = @transform_3, window_bounds = array<i64: 64, 1>}, {transform_indices = @transform_4, window_bounds = array<i64: 64, 128>}]} {
    %c0 = arith.constant 0 : index
    %c0_0 = arith.constant 0 : index
    %0 = vector.load %arg2[%c0, %c0_0] : memref<64x32xbf16, #tpu.memory_space<vmem>>, vector<64x32xbf16>
    %c0_1 = arith.constant 0 : index
    %c0_2 = arith.constant 0 : index
    %1 = vector.load %arg1[%c0_1, %c0_2] : memref<32x128xbf16, #tpu.memory_space<vmem>>, vector<32x128xbf16>
    %cst = arith.constant dense<0.000000e+00> : vector<64x128xf32>
    %2 = tpu.matmul %0, %1, %cst {dimension_numbers = #tpu.dot_dimension_numbers<[1], [0], [0], [1], [0, 0, 1, 1], [], []>} : vector<64x32xbf16>, vector<32x128xbf16>, vector<64x128xf32> -> vector<64x128xf32>
    %c0_3 = arith.constant 0 : index
    %c0_4 = arith.constant 0 : index
    %3 = vector.load %arg3[%c0_3, %c0_4] : memref<64x1xf32, #tpu.memory_space<vmem>>, vector<64x1xf32>
    %4 = vector.broadcast %3 : vector<64x1xf32> to vector<64x128xf32>
    %5 = arith.mulf %2, %4 : vector<64x128xf32>
    %c0_5 = arith.constant 0 : index
    %c0_6 = arith.constant 0 : index
    %6 = vector.load %arg4[%c0_5, %c0_6] : memref<64x1xf32, #tpu.memory_space<vmem>>, vector<64x1xf32>
    %7 = vector.broadcast %6 : vector<64x1xf32> to vector<64x128xf32>
    %8 = arith.addf %5, %7 : vector<64x128xf32>
    %cst_7 = arith.constant 0.000000e+00 : f32
    %9 = vector.broadcast %cst_7 : f32 to vector<64x128xf32>
    %10 = arith.maximumf %8, %9 : vector<64x128xf32>
    %11 = arith.truncf %10 : vector<64x128xf32> to vector<64x128xbf16>
    %c0_8 = arith.constant 0 : index
    %c0_9 = arith.constant 0 : index
    %12 = vector.load %arg5[%c0_8, %c0_9] : memref<64x128xbf16, #tpu.memory_space<vmem>>, vector<64x128xbf16>
    tpu.vector_store %arg5[%c0_8, %c0_9], %11 {strides = array<i32>} : memref<64x128xbf16, #tpu.memory_space<vmem>>, vector<64x128xbf16>,
    return
  }
  func.func @transform_0(%arg0: i32) -> (i32, i32) {
    %c0_i32 = arith.constant 0 : i32
    %c0_i32_0 = arith.constant 0 : i32
    return %c0_i32, %arg0 : i32, i32
  }
  func.func @transform_1(%arg0: i32) -> (i32, i32) {
    %c0_i32 = arith.constant 0 : i32
    %c0_i32_0 = arith.constant 0 : i32
    %c0_i32_1 = arith.constant 0 : i32
    return %c0_i32, %c0_i32_0 : i32, i32
  }
  func.func @transform_2(%arg0: i32) -> (i32, i32) {
    %c0_i32 = arith.constant 0 : i32
    %c0_i32_0 = arith.constant 0 : i32
    %c0_i32_1 = arith.constant 0 : i32
    return %c0_i32, %c0_i32_0 : i32, i32
  }
  func.func @transform_3(%arg0: i32) -> (i32, i32) {
    %c0_i32 = arith.constant 0 : i32
    %c0_i32_0 = arith.constant 0 : i32
    %c0_i32_1 = arith.constant 0 : i32
    return %c0_i32, %c0_i32_0 : i32, i32
  }
  func.func @transform_4(%arg0: i32) -> (i32, i32) {
    %c0_i32 = arith.constant 0 : i32
    %c0_i32_0 = arith.constant 0 : i32
    return %c0_i32, %arg0 : i32, i32
  }
}

</mosaic_0001>

<llo_original>
// kernel: tile.0
$region0: #{tile.0}
  %s0 = inlined_call_operand.vmem [shape: f32[8,8], index: 0, kind: input, shape index: {}]
  %s1 = inlined_call_operand.vmem [shape: f32[64,1], index: 1, kind: output, shape index: {}]
  %v2 = vld [vmem:[%s0] sm:$0xff]
  %vm3 = vcmask 7168
  %4 = vst.msk [vmem:[%s1] ss:$8 sm:$0xf] %vm3, %v2
  %5 = vst.msk [vmem:[%s1] ss:$8 sm:$0xf0] %vm3, %v2
  %v6 = vld [vmem:[%s0] sm:$0xff]
  %7 = vrot.lane.b32.xlu0 %v6, 127
  %v8 = vpop.permute.xlu0 %7
  %vm9 = vcmask 7168
  %s10 = scalar_lea.vmem %s1, 1
  %11 = vst.msk [vmem:[%s10] ss:$8 sm:$0xf] %vm9, %v8
  %s12 = scalar_lea.vmem %s1, 1
  %13 = vst.msk [vmem:[%s12] ss:$8 sm:$0xf0] %vm9, %v8
  %v14 = vld [vmem:[%s0] sm:$0xff]
  %15 = vrot.lane.b32.xlu0 %v14, 126
  %v16 = vpop.permute.xlu0 %15
  %vm17 = vcmask 7168
  %s18 = scalar_lea.vmem %s1, 2
  %19 = vst.msk [vmem:[%s18] ss:$8 sm:$0xf] %vm17, %v16
  %s20 = scalar_lea.vmem %s1, 2
  %21 = vst.msk [vmem:[%s20] ss:$8 sm:$0xf0] %vm17, %v16
  %v22 = vld [vmem:[%s0] sm:$0xff]
  %23 = vrot.lane.b32.xlu0 %v22, 125
  %v24 = vpop.permute.xlu0 %23
  %vm25 = vcmask 7168
  %s26 = scalar_lea.vmem %s1, 3
  %27 = vst.msk [vmem:[%s26] ss:$8 sm:$0xf] %vm25, %v24
  %s28 = scalar_lea.vmem %s1, 3
  %29 = vst.msk [vmem:[%s28] ss:$8 sm:$0xf0] %vm25, %v24
  %v30 = vld [vmem:[%s0] sm:$0xff]
  %31 = vrot.lane.b32.xlu0 %v30, 124
  %v32 = vpop.permute.xlu0 %31
  %vm33 = vcmask 7168
  %s34 = scalar_lea.vmem %s1, 4
  %35 = vst.msk [vmem:[%s34] ss:$8 sm:$0xf] %vm33, %v32
  %s36 = scalar_lea.vmem %s1, 4
  %37 = vst.msk [vmem:[%s36] ss:$8 sm:$0xf0] %vm33, %v32
  %v38 = vld [vmem:[%s0] sm:$0xff]
  %39 = vrot.lane.b32.xlu0 %v38, 123
  %v40 = vpop.permute.xlu0 %39
  %vm41 = vcmask 7168
  %s42 = scalar_lea.vmem %s1, 5
  %43 = vst.msk [vmem:[%s42] ss:$8 sm:$0xf] %vm41, %v40
  %s44 = scalar_lea.vmem %s1, 5
  %45 = vst.msk [vmem:[%s44] ss:$8 sm:$0xf0] %vm41, %v40
  %v46 = vld [vmem:[%s0] sm:$0xff]
  %47 = vrot.lane.b32.xlu0 %v46, 122
  %v48 = vpop.permute.xlu0 %47
  %vm49 = vcmask 7168
  %s50 = scalar_lea.vmem %s1, 6
  %51 = vst.msk [vmem:[%s50] ss:$8 sm:$0xf] %vm49, %v48
  %s52 = scalar_lea.vmem %s1, 6
  %53 = vst.msk [vmem:[%s52] ss:$8 sm:$0xf0] %vm49, %v48
  %v54 = vld [vmem:[%s0] sm:$0xff]
  %55 = vrot.lane.b32.xlu0 %v54, 121
  %v56 = vpop.permute.xlu0 %55
  %vm57 = vcmask 7168
  %s58 = scalar_lea.vmem %s1, 7
  %59 = vst.msk [vmem:[%s58] ss:$8 sm:$0xf] %vm57, %v56
  %s60 = scalar_lea.vmem %s1, 7
  %61 = vst.msk [vmem:[%s60] ss:$8 sm:$0xf0] %vm57, %v56

// kernel: tile.13
$region0: #{tile.13}
  #allocation0 [shape = 's32[1]{0}', space=sflag, size = 0x4, scoped, tag = 'scoped memory for tile.13']
  %s0 = inlined_call_operand.vmem [shape: f32[8], index: 0, kind: input, shape index: {}]
  %s1 = inlined_call_operand.vmem [shape: f32[8,8], index: 1, kind: output, shape index: {}]
  // Predicated region
  $region2: #{tile.13} parent=0 // pred_check
    _
  $region3: #{tile.13} parent=0 // pred_check_branch
    %3 = sbr.rel (0) target = $region5
  $region4: #{tile.13} parent=0 // pred_region
    _
  $region5: #{tile.13} parent=0 // pred_fallthru
    _
  %v4 = vld [vmem:[%s0] ss:$0 sm:$0xff]
  %5 = vst [vmem:[%s1] sm:$0xff] %v4

// kernel: generator_block_forward.2
$region0: #{generator_block_forward.2}
  #allocation0 [shape = 'u32[]', space=smem, size = 0x4, offset = 0x4, fixed_abs, tag = 'smem constant byte address 0x4 - core index']
  #allocation1 [shape = 'u32[72,128]{1,0:T(1,128)}', space=vmem, size = 0x9000, scoped, tag = 'internal scratch']
  %s0 = inlined_call_operand.vmem [shape: bf16[32,250], index: 0, kind: input, shape index: {}]
  %s1 = inlined_call_operand.vmem [shape: bf16[64,32], index: 1, kind: input, shape index: {}]
  %s2 = inlined_call_operand.vmem [shape: f32[2,64,1], index: 2, kind: output, shape index: {0}]
  %s3 = inlined_call_operand.vmem [shape: f32[2,64,1], index: 3, kind: output, shape index: {1}]
  %4 = xla_tuple %s2, %s3
  %s5 = sld [smem:[#allocation0]]
  $region53: #{generator_block_forward.2} parent=0
    _
  %s7 = ssub.s32 1, %s5
  %s8 = scalar_select 0, %s7, %s5
  loop: start=0, step=1, limit=4
  $region2: #{generator_block_forward.2} parent=0 // loop_pre_header
    _
  $region3: #{generator_block_forward.2} parent=0 // loop_header
    %s10 = sphi 0, %s14
    %p11 = scmp.ge.s32.totalorder %s10, 4
    %s17 = sphi 0, %s29
    %s18 = sphi 0, %s25
    %s19 = sphi 0, %s17
    %s20 = sphi 0, %s18
    %s21 = sphi 0, %s19
    %s22 = sphi 0, %s20
    %s38 = sphi 0, %s40
    %s41 = sphi 0, %s38
    %s42 = sphi 0, %s41
    %s58 = sphi 0, %s42
    %s62 = sphi 0, %s62
    %s64 = sphi 0, %s62
    %s65 = sphi 0, %s64
    %s79 = sphi 0, %s65
    %s85 = sphi 0, %s87
    %s88 = sphi 0, %s85
    %s89 = sphi 0, %s88
    %s105 = sphi 0, %s89
    %s111 = sphi 0, %s113
    %s114 = sphi 0, %s111
    %s115 = sphi 0, %s114
    %s131 = sphi 0, %s115
  $region4: #{generator_block_forward.2} parent=0 // loop_header_branch
    %13 = sbr.rel (%p11) target = $region8
  $region5: #{generator_block_forward.2} parent=0 // loop_body
    %s15 = ssub.s32 %s10, 1
    %s16 = ssub.s32 %s10, 2
    %s23 = sadd.s32 1, %s18
    %p24 = scmp.ge.s32.totalorder %s23, 1
    %s25 = scalar_select %p24, 0, %s23
    %s26 = sadd.s32 1, %s17
    %s27 = scalar_select %p24, %s26, %s17
    %p28 = scmp.ge.s32.totalorder %s27, 2
    %s29 = scalar_select %p28, 0, %s27
    %s30 = sadd.s32 %s17, %s18
    %p31 = scmp.lt.s32.totalorder %s30, 0
    %s32 = scalar_select %p31, %s30, 0
    %s33 = sadd.s32 %s29, %s25
    %p34 = scmp.lt.s32.totalorder %s33, 0
    %s35 = scalar_select %p34, %s33, 0
    %s36 = ssub.s32 %s32, %s35
    %p37 = scmp.eq.s32.totalorder %s36, 0
    %s39 = sadd.s32 %s38, 1
    %s40 = scalar_select %p37, %s38, %s39
    %p43 = pneg %p37
    %p44 = scmp.eq.s32.totalorder %s10, 1
    %p45 = por %p43, %p44
    %p46 = scmp.ne.s32.totalorder %s38, %s41
    %p47 = scmp.eq.s32.totalorder %s10, 0
    %p48 = por %p46, %p47
    %p49 = scmp.ne.s32.totalorder %s38, %s41
    %p50 = scmp.eq.s32.totalorder %s15, 1
    %p51 = por %p49, %p50
    %p52 = scmp.ne.s32.totalorder %s41, %s42
    %p53 = scmp.eq.s32.totalorder %s15, 0
    %p54 = por %p52, %p53
    %p55 = scmp.ne.s32.totalorder %s41, %s42
    %p56 = scmp.eq.s32.totalorder %s16, 1
    %p57 = por %p55, %p56
    %p59 = scmp.ne.s32.totalorder %s42, %s58
    %p60 = scmp.eq.s32.totalorder %s16, 0
    %p61 = por %p59, %p60
    %s63 = sadd.s32 %s62, 1
    %p66 = scmp.eq.s32.totalorder %s10, 1
    %p67 = scmp.ne.s32.totalorder %s62, %s64
    %p68 = scmp.eq.s32.totalorder %s10, 0
    %p69 = por %p67, %p68
    %p70 = scmp.ne.s32.totalorder %s62, %s64
    %p71 = scmp.eq.s32.totalorder %s15, 1
    %p72 = por %p70, %p71
    %p73 = scmp.ne.s32.totalorder %s64, %s65
    %p74 = scmp.eq.s32.totalorder %s15, 0
    %p75 = por %p73, %p74
    %p76 = scmp.ne.s32.totalorder %s64, %s65
    %p77 = scmp.eq.s32.totalorder %s16, 1
    %p78 = por %p76, %p77
    %p80 = scmp.ne.s32.totalorder %s65, %s79
    %p81 = scmp.eq.s32.totalorder %s16, 0
    %p82 = por %p80, %p81
    %s83 = ssub.s32 %s17, %s29
    %p84 = scmp.eq.s32.totalorder %s83, 0
    %s86 = sadd.s32 %s85, 1
    %s87 = scalar_select %p84, %s85, %s86
    %p90 = pneg %p84
    %p91 = scmp.eq.s32.totalorder %s10, 1
    %p92 = por %p90, %p91
    %p93 = scmp.ne.s32.totalorder %s85, %s88
    %p94 = scmp.eq.s32.totalorder %s10, 0
    %p95 = por %p93, %p94
    %p96 = scmp.ne.s32.totalorder %s85, %s88
    %p97 = scmp.eq.s32.totalorder %s15, 1
    %p98 = por %p96, %p97
    %p99 = scmp.ne.s32.totalorder %s88, %s89
    %p100 = scmp.eq.s32.totalorder %s15, 0
    %p101 = por %p99, %p100
    %p102 = scmp.ne.s32.totalorder %s88, %s89
    %p103 = scmp.eq.s32.totalorder %s16, 1
    %p104 = por %p102, %p103
    %p106 = scmp.ne.s32.totalorder %s89, %s105
    %p107 = scmp.eq.s32.totalorder %s16, 0
    %p108 = por %p106, %p107
    %s109 = ssub.s32 %s17, %s29
    %p110 = scmp.eq.s32.totalorder %s109, 0
    %s112 = sadd.s32 %s111, 1
    %s113 = scalar_select %p110, %s111, %s112
    %p116 = pneg %p110
    %p117 = scmp.eq.s32.totalorder %s10, 1
    %p118 = por %p116, %p117
    %p119 = scmp.ne.s32.totalorder %s111, %s114
    %p120 = scmp.eq.s32.totalorder %s10, 0
    %p121 = por %p119, %p120
    %p122 = scmp.ne.s32.totalorder %s111, %s114
    %p123 = scmp.eq.s32.totalorder %s15, 1
    %p124 = por %p122, %p123
    %p125 = scmp.ne.s32.totalorder %s114, %s115
    %p126 = scmp.eq.s32.totalorder %s15, 0
    %p127 = por %p125, %p126
    %p128 = scmp.ne.s32.totalorder %s114, %s115
    %p129 = scmp.eq.s32.totalorder %s16, 1
    %p130 = por %p128, %p129
    %p132 = scmp.ne.s32.totalorder %s115, %s131
    %p133 = scmp.eq.s32.totalorder %s16, 0
    %p134 = por %p132, %p133
    %p135 = scmp.le.s32.totalorder 1, %s10
    %p136 = scmp.lt.s32.totalorder %s10, 3
    %p137 = pnand %p135, %p136
    %p138 = pneg %p137
    // Predicated region
    $region9: #{generator_block_forward.2} parent=5 // pred_check
      _
    $region10: #{generator_block_forward.2} parent=5 // pred_check_branch
      %140 = sbr.rel (%p137) target = $region12
    $region11: #{generator_block_forward.2} parent=5 // pred_region
      %s141 = ssub.s32 %s10, 1
      // Predicated region
      $region13: #{generator_block_forward.2} parent=11 // pred_check
        %p142 = pneg %p75
      $region14: #{generator_block_forward.2} parent=11 // pred_check_branch
        %144 = sbr.rel (%p142) target = $region16
      $region15: #{generator_block_forward.2} parent=11 // pred_region
        _
      $region16: #{generator_block_forward.2} parent=11 // pred_fallthru
        _
    $region12: #{generator_block_forward.2} parent=5 // pred_fallthru
      _
    %p145 = scmp.lt.s32.totalorder %s10, 2
    // Predicated region
    $region17: #{generator_block_forward.2} parent=5 // pred_check
      %p146 = pneg %p145
    $region18: #{generator_block_forward.2} parent=5 // pred_check_branch
      %148 = sbr.rel (%p146) target = $region20
    $region19: #{generator_block_forward.2} parent=5 // pred_region
      // Predicated region
      $region21: #{generator_block_forward.2} parent=19 // pred_check
        %p149 = pneg %p48
      $region22: #{generator_block_forward.2} parent=19 // pred_check_branch
        %151 = sbr.rel (%p149) target = $region24
      $region23: #{generator_block_forward.2} parent=19 // pred_region
        %s152 = sadd.s32 %s17, %s18
        %p153 = scmp.lt.s32.totalorder %s152, 0
        %s154 = scalar_select %p153, %s152, 0
        %s155 = smul.u32 2, %s154
        %p156 = scmp.lt.s32.totalorder %s155, 1
        %s157 = scalar_select %p156, %s155, 1
        %s158 = smul.addr %s157, 4
        %s159 = scalar_lea.vmem %s0, %s158
        %s160 = sadd.s32 %s17, %s18
        %p161 = scmp.lt.s32.totalorder %s160, 0
        %s162 = scalar_select %p161, %s160, 0
        %s163 = smul.u32 2, %s162
      $region24: #{generator_block_forward.2} parent=19 // pred_fallthru
        _
    $region20: #{generator_block_forward.2} parent=5 // pred_fallthru
      _
    %p164 = scmp.le.s32.totalorder 1, %s10
    %p165 = scmp.lt.s32.totalorder %s10, 3
    %p166 = pnand %p164, %p165
    %p167 = pneg %p166
    // Predicated region
    $region25: #{generator_block_forward.2} parent=5 // pred_check
      _
    $region26: #{generator_block_forward.2} parent=5 // pred_check_branch
      %169 = sbr.rel (%p166) target = $region28
    $region27: #{generator_block_forward.2} parent=5 // pred_region
      %s170 = ssub.s32 %s10, 1
      %s171 = sadd.s32 %s19, %s20
      %p172 = scmp.lt.s32.totalorder %s171, 0
      %s173 = scalar_select %p172, %s171, 0
      %s174 = smul.u32 2, %s173
      %p175 = scmp.lt.s32.totalorder %s174, 1
      %s176 = scalar_select %p175, %s174, 1
      %s177 = smul.addr %s176, 4
      %s178 = scalar_lea.vmem %s0, %s177
      %p179 = pneg %p54
      %p180 = pneg %p51
      %p181 = pneg %p75
      %p182 = pneg %p72
      %p183 = pneg %p101
      %p184 = pneg %p98
      %p185 = scmp.lt.s32.totalorder %s19, 1
      %s186 = scalar_select %p185, %s19, 1
      %s187 = smul.addr %s186, 8
      %s188 = smul.addr %s187, 8
      %s189 = scalar_lea.vmem %s2, %s188
      %p190 = pneg %p127
      %p191 = pneg %p124
      %p192 = scmp.lt.s32.totalorder %s19, 1
      %s193 = scalar_select %p192, %s19, 1
      %s194 = smul.addr %s193, 8
      %s195 = smul.addr %s194, 8
      %s196 = scalar_lea.vmem %s3, %s195
      %s197 = sadd.s32 %s19, %s20
      %p198 = scmp.lt.s32.totalorder %s197, 0
      %s199 = scalar_select %p198, %s197, 0
      %s200 = smul.u32 2, %s199
      %p201 = scmp.lt.s32.totalorder %s200, 1
      %s202 = scalar_select %p201, %s200, 1
      %s203 = smul.addr %s202, 4
      %s204 = scalar_lea.vmem %s0, %s203
      %s205 = sadd.s32 %s19, %s20
      %p206 = scmp.lt.s32.totalorder %s205, 0
      %s207 = scalar_select %p206, %s205, 0
      %s208 = smul.u32 2, %s207
      %p209 = scmp.lt.s32.totalorder %s19, 1
      %s210 = scalar_select %p209, %s19, 1
      %s211 = smul.addr %s210, 8
      %s212 = smul.addr %s211, 8
      %s213 = scalar_lea.vmem %s2, %s212
      %p214 = scmp.lt.s32.totalorder %s19, 1
      %s215 = scalar_select %p214, %s19, 1
      %s216 = smul.addr %s215, 8
      %s217 = smul.addr %s216, 8
      %s218 = scalar_lea.vmem %s3, %s217
      %p220 = scmp.eq.s32.totalorder %s20, 0
      // Predicated region
      $region29: #{generator_block_forward.2} parent=27 // pred_check
        %p221 = pneg %p220
      $region30: #{generator_block_forward.2} parent=27 // pred_check_branch
        %223 = sbr.rel (%p221) target = $region32
      $region31: #{generator_block_forward.2} parent=27 // pred_region
        %vm224 = vcmask 7168
        %225 = vst.msk [vmem:[%s213] sm:$0xff] %vm224, 0.0
        %226 = vst.msk [vmem:[%s213 + $0x8] sm:$0xff] %vm224, 0.0
        %227 = vst.msk [vmem:[%s213 + $0x10] sm:$0xff] %vm224, 0.0
        %228 = vst.msk [vmem:[%s213 + $0x18] sm:$0xff] %vm224, 0.0
        %229 = vst.msk [vmem:[%s213 + $0x20] sm:$0xff] %vm224, 0.0
        %230 = vst.msk [vmem:[%s213 + $0x28] sm:$0xff] %vm224, 0.0
        %231 = vst.msk [vmem:[%s213 + $0x30] sm:$0xff] %vm224, 0.0
        %232 = vst.msk [vmem:[%s213 + $0x38] sm:$0xff] %vm224, 0.0
        %233 = vst.msk [vmem:[%s218] sm:$0xff] %vm224, 0.0
        %234 = vst.msk [vmem:[%s218 + $0x8] sm:$0xff] %vm224, 0.0
        %235 = vst.msk [vmem:[%s218 + $0x10] sm:$0xff] %vm224, 0.0
        %236 = vst.msk [vmem:[%s218 + $0x18] sm:$0xff] %vm224, 0.0
        %237 = vst.msk [vmem:[%s218 + $0x20] sm:$0xff] %vm224, 0.0
        %238 = vst.msk [vmem:[%s218 + $0x28] sm:$0xff] %vm224, 0.0
        %239 = vst.msk [vmem:[%s218 + $0x30] sm:$0xff] %vm224, 0.0
        %240 = vst.msk [vmem:[%s218 + $0x38] sm:$0xff] %vm224, 0.0
      $region32: #{generator_block_forward.2} parent=27 // pred_fallthru
        _
      %s241 = sadd.s32 %s19, %s20
      %s242 = smul.u32 %s241, 256
      %v243 = vlaneseq
      %v244 = vand.u32 %v243, 127
      %v245 = vadd.s32 %v244, 128
      %v246 = vstv %s242
      %v247 = vadd.s32 %v246, %v244
      %v248 = vadd.s32 %v246, %v245
      %vm249 = vcmp.lt.s32.totalorder %v247, 250
      %vm250 = vcmp.lt.s32.totalorder %v248, 250
      %v251 = vld [vmem:[%s204] sm:$0xff]
      %v252 = vld [vmem:[%s204 + $0x8] sm:$0xff]
      %v253 = vld [vmem:[%s204 + $0x10] sm:$0xff]
      %v254 = vld [vmem:[%s204 + $0x18] sm:$0xff]
      %v255 = vsel %vm249, 1, 0
      %v256 = vsel %vm250, 1, 0
      %vm257 = vcmp.eq.s32.totalorder %v255, 1
      %vm258 = vcmp.eq.s32.totalorder %v256, 1
      %vm259 = vmpackc.low %vm258, %vm257
      %v260 = vsel %vm259, %v251, 0
      %v261 = vsel %vm259, %v252, 0
      %v262 = vsel %vm259, %v253, 0
      %v263 = vsel %vm259, %v254, 0
      %v264 = vld [vmem:[%s1] sm:$0xf]
      %v265 = vld [vmem:[%s1 + $0x4] sm:$0xf]
      %v266 = vld [vmem:[%s1 + $0x8] sm:$0xf]
      %v267 = vld [vmem:[%s1 + $0xc] sm:$0xf]
      %v268 = vld [vmem:[%s1 + $0x10] sm:$0xf]
      %v269 = vld [vmem:[%s1 + $0x14] sm:$0xf]
      %v270 = vld [vmem:[%s1 + $0x18] sm:$0xf]
      %v271 = vld [vmem:[%s1 + $0x1c] sm:$0xf]
      %v280 = vunpack.c.l.b16 %v264
      %v281 = vunpack.c.l.b16 %v265
      %v282 = vunpack.c.l.b16 %v266
      %v283 = vunpack.c.l.b16 %v267
      %v284 = vunpack.c.l.b16 %v268
      %v285 = vunpack.c.l.b16 %v269
      %v286 = vunpack.c.l.b16 %v270
      %v287 = vunpack.c.l.b16 %v271
      %v288 = vpack.c.b16 %v281, %v280
      %v289 = vpack.c.b16 %v283, %v282
      %v290 = vpack.c.b16 %v285, %v284
      %v291 = vpack.c.b16 %v287, %v286
      %v296 = vunpack.c.l.b16 %v260
      %v297 = vunpack.c.h.b16 %v260
      %v298 = vunpack.c.l.b16 %v261
      %v299 = vunpack.c.h.b16 %v261
      %v300 = vunpack.c.l.b16 %v262
      %v301 = vunpack.c.h.b16 %v262
      %v302 = vunpack.c.l.b16 %v263
      %v303 = vunpack.c.h.b16 %v263
      %v304 = vpack.c.b16 %v298, %v296
      %v305 = vpack.c.b16 %v299, %v297
      %v306 = vpack.c.b16 %v302, %v300
      %v307 = vpack.c.b16 %v303, %v301
      %vm312 = vcmask 261120
      %v314 = vsel %vm312, %v288, 0
      %v317 = vsel %vm312, %v289, 0
      %v320 = vsel %vm312, %v290, 0
      %v323 = vsel %vm312, %v291, 0
      %325 = vmatpush.bf16.msra.mxu0 0
      %326 = vmatpush.bf16.msra.mxu0 0
      %327 = vmatpush.bf16.msra.mxu0 0
      %328 = vmatpush.bf16.msra.mxu0 0
      %329 = vmatpush.bf16.msra.mxu0 0
      %330 = vmatpush.bf16.msra.mxu0 0
      %331 = vmatpush.bf16.msra.mxu0 %v306
      %332 = vmatpush.bf16.msra.mxu0 %v304
      %333 = vmatmul.bf16.gmra.mxu0 %v314
      %v334 = vpop.f32.mrf.mxu0
      %v335 = vadd.f32 0.0, %v334
      %v336 = vpop.f32.mrf.mxu0
      %v337 = vadd.f32 0.0, %v336
      %338 = vmatmul.bf16.gmra.mxu0 %v317
      %v339 = vpop.f32.mrf.mxu0
      %v340 = vadd.f32 0.0, %v339
      %v341 = vpop.f32.mrf.mxu0
      %v342 = vadd.f32 0.0, %v341
      %343 = vmatmul.bf16.gmra.mxu0 %v320
      %v344 = vpop.f32.mrf.mxu0
      %v345 = vadd.f32 0.0, %v344
      %v346 = vpop.f32.mrf.mxu0
      %v347 = vadd.f32 0.0, %v346
      %348 = vmatmul.bf16.gmra.mxu0 %v323
      %v349 = vpop.f32.mrf.mxu0
      %v350 = vadd.f32 0.0, %v349
      %v351 = vpop.f32.mrf.mxu0
      %v352 = vadd.f32 0.0, %v351
      %353 = vdwg.mxu0
      %354 = vmatpush.bf16.msra.mxu0 0
      %355 = vmatpush.bf16.msra.mxu0 0
      %356 = vmatpush.bf16.msra.mxu0 0
      %357 = vmatpush.bf16.msra.mxu0 0
      %358 = vmatpush.bf16.msra.mxu0 0
      %359 = vmatpush.bf16.msra.mxu0 0
      %360 = vmatpush.bf16.msra.mxu0 %v307
      %361 = vmatpush.bf16.msra.mxu0 %v305
      %362 = vmatmul.bf16.gmra.mxu0 %v314
      %v363 = vpop.f32.mrf.mxu0
      %v364 = vadd.f32 0.0, %v363
      %v365 = vpop.f32.mrf.mxu0
      %v366 = vadd.f32 0.0, %v365
      %367 = vmatmul.bf16.gmra.mxu0 %v317
      %v368 = vpop.f32.mrf.mxu0
      %v369 = vadd.f32 0.0, %v368
      %v370 = vpop.f32.mrf.mxu0
      %v371 = vadd.f32 0.0, %v370
      %372 = vmatmul.bf16.gmra.mxu0 %v320
      %v373 = vpop.f32.mrf.mxu0
      %v374 = vadd.f32 0.0, %v373
      %v375 = vpop.f32.mrf.mxu0
      %v376 = vadd.f32 0.0, %v375
      %377 = vmatmul.bf16.gmra.mxu0 %v323
      %v378 = vpop.f32.mrf.mxu0
      %v379 = vadd.f32 0.0, %v378
      %v380 = vpop.f32.mrf.mxu0
      %v381 = vadd.f32 0.0, %v380
      %382 = vdwg.mxu0
      %v383 = vld [vmem:[%s213] sm:$0xff]
      %v384 = vld [vmem:[%s213 + $0x8] sm:$0xff]
      %v385 = vld [vmem:[%s213 + $0x10] sm:$0xff]
      %v386 = vld [vmem:[%s213 + $0x18] sm:$0xff]
      %v387 = vld [vmem:[%s213 + $0x20] sm:$0xff]
      %v388 = vld [vmem:[%s213 + $0x28] sm:$0xff]
      %v389 = vld [vmem:[%s213 + $0x30] sm:$0xff]
      %v390 = vld [vmem:[%s213 + $0x38] sm:$0xff]
      %v391 = vadd.f32 %v335, %v364
      %392 = vadd.xlane.f32.xlu0 %v391
      %v393 = vpop.xlane.xlu0 %392
      %v394 = vadd.f32 %v337, %v366
      %395 = vadd.xlane.f32.xlu0 %v394
      %v396 = vpop.xlane.xlu0 %395
      %v397 = vadd.f32 %v340, %v369
      %398 = vadd.xlane.f32.xlu0 %v397
      %v399 = vpop.xlane.xlu0 %398
      %v400 = vadd.f32 %v342, %v371
      %401 = vadd.xlane.f32.xlu0 %v400
      %v402 = vpop.xlane.xlu0 %401
      %v403 = vadd.f32 %v345, %v374
      %404 = vadd.xlane.f32.xlu0 %v403
      %v405 = vpop.xlane.xlu0 %404
      %v406 = vadd.f32 %v347, %v376
      %407 = vadd.xlane.f32.xlu0 %v406
      %v408 = vpop.xlane.xlu0 %407
      %v409 = vadd.f32 %v350, %v379
      %410 = vadd.xlane.f32.xlu0 %v409
      %v411 = vpop.xlane.xlu0 %410
      %v412 = vadd.f32 %v352, %v381
      %413 = vadd.xlane.f32.xlu0 %v412
      %v414 = vpop.xlane.xlu0 %413
      %v415 = vadd.f32 %v383, %v393
      %v416 = vadd.f32 %v384, %v396
      %v417 = vadd.f32 %v385, %v399
      %v418 = vadd.f32 %v386, %v402
      %v419 = vadd.f32 %v387, %v405
      %v420 = vadd.f32 %v388, %v408
      %v421 = vadd.f32 %v389, %v411
      %v422 = vadd.f32 %v390, %v414
      %vm423 = vcmask 7168
      %424 = vst.msk [vmem:[%s213] sm:$0xff] %vm423, %v415
      %425 = vst.msk [vmem:[%s213 + $0x8] sm:$0xff] %vm423, %v416
      %426 = vst.msk [vmem:[%s213 + $0x10] sm:$0xff] %vm423, %v417
      %427 = vst.msk [vmem:[%s213 + $0x18] sm:$0xff] %vm423, %v418
      %428 = vst.msk [vmem:[%s213 + $0x20] sm:$0xff] %vm423, %v419
      %429 = vst.msk [vmem:[%s213 + $0x28] sm:$0xff] %vm423, %v420
      %430 = vst.msk [vmem:[%s213 + $0x30] sm:$0xff] %vm423, %v421
      %431 = vst.msk [vmem:[%s213 + $0x38] sm:$0xff] %vm423, %v422
      %v432 = vld [vmem:[%s218] sm:$0xff]
      %v433 = vld [vmem:[%s218 + $0x8] sm:$0xff]
      %v434 = vld [vmem:[%s218 + $0x10] sm:$0xff]
      %v435 = vld [vmem:[%s218 + $0x18] sm:$0xff]
      %v436 = vld [vmem:[%s218 + $0x20] sm:$0xff]
      %v437 = vld [vmem:[%s218 + $0x28] sm:$0xff]
      %v438 = vld [vmem:[%s218 + $0x30] sm:$0xff]
      %v439 = vld [vmem:[%s218 + $0x38] sm:$0xff]
      %v440 = vmul.f32 %v335, %v335
      %v441 = vmul.f32 %v364, %v364
      %v442 = vmul.f32 %v337, %v337
      %v443 = vmul.f32 %v366, %v366
      %v444 = vmul.f32 %v340, %v340
      %v445 = vmul.f32 %v369, %v369
      %v446 = vmul.f32 %v342, %v342
      %v447 = vmul.f32 %v371, %v371
      %v448 = vmul.f32 %v345, %v345
      %v449 = vmul.f32 %v374, %v374
      %v450 = vmul.f32 %v347, %v347
      %v451 = vmul.f32 %v376, %v376
      %v452 = vmul.f32 %v350, %v350
      %v453 = vmul.f32 %v379, %v379
      %v454 = vmul.f32 %v352, %v352
      %v455 = vmul.f32 %v381, %v381
      %v456 = vadd.f32 %v440, %v441
      %457 = vadd.xlane.f32.xlu0 %v456
      %v458 = vpop.xlane.xlu0 %457
      %v459 = vadd.f32 %v442, %v443
      %460 = vadd.xlane.f32.xlu0 %v459
      %v461 = vpop.xlane.xlu0 %460
      %v462 = vadd.f32 %v444, %v445
      %463 = vadd.xlane.f32.xlu0 %v462
      %v464 = vpop.xlane.xlu0 %463
      %v465 = vadd.f32 %v446, %v447
      %466 = vadd.xlane.f32.xlu0 %v465
      %v467 = vpop.xlane.xlu0 %466
      %v468 = vadd.f32 %v448, %v449
      %469 = vadd.xlane.f32.xlu0 %v468
      %v470 = vpop.xlane.xlu0 %469
      %v471 = vadd.f32 %v450, %v451
      %472 = vadd.xlane.f32.xlu0 %v471
      %v473 = vpop.xlane.xlu0 %472
      %v474 = vadd.f32 %v452, %v453
      %475 = vadd.xlane.f32.xlu0 %v474
      %v476 = vpop.xlane.xlu0 %475
      %v477 = vadd.f32 %v454, %v455
      %478 = vadd.xlane.f32.xlu0 %v477
      %v479 = vpop.xlane.xlu0 %478
      %v480 = vadd.f32 %v432, %v458
      %v481 = vadd.f32 %v433, %v461
      %v482 = vadd.f32 %v434, %v464
      %v483 = vadd.f32 %v435, %v467
      %v484 = vadd.f32 %v436, %v470
      %v485 = vadd.f32 %v437, %v473
      %v486 = vadd.f32 %v438, %v476
      %v487 = vadd.f32 %v439, %v479
      %488 = vst.msk [vmem:[%s218] sm:$0xff] %vm423, %v480
      %489 = vst.msk [vmem:[%s218 + $0x8] sm:$0xff] %vm423, %v481
      %490 = vst.msk [vmem:[%s218 + $0x10] sm:$0xff] %vm423, %v482
      %491 = vst.msk [vmem:[%s218 + $0x18] sm:$0xff] %vm423, %v483
      %492 = vst.msk [vmem:[%s218 + $0x20] sm:$0xff] %vm423, %v484
      %493 = vst.msk [vmem:[%s218 + $0x28] sm:$0xff] %vm423, %v485
      %494 = vst.msk [vmem:[%s218 + $0x30] sm:$0xff] %vm423, %v486
      %495 = vst.msk [vmem:[%s218 + $0x38] sm:$0xff] %vm423, %v487
      %p496 = scmp.lt.s32.totalorder %s19, 1
      %s497 = scalar_select %p496, %s19, 1
      %s498 = smul.addr %s497, 8
      %s499 = smul.addr %s498, 8
      %s500 = scalar_lea.vmem %s2, %s499
      %p501 = scmp.lt.s32.totalorder %s19, 1
      %s502 = scalar_select %p501, %s19, 1
      %s503 = smul.addr %s502, 8
      %s504 = smul.addr %s503, 8
      %s505 = scalar_lea.vmem %s3, %s504
      // Predicated region
      $region33: #{generator_block_forward.2} parent=27 // pred_check
        %p506 = pneg %p98
      $region34: #{generator_block_forward.2} parent=27 // pred_check_branch
        %508 = sbr.rel (%p506) target = $region36
      $region35: #{generator_block_forward.2} parent=27 // pred_region
        _
      $region36: #{generator_block_forward.2} parent=27 // pred_fallthru
        _
      // Predicated region
      $region37: #{generator_block_forward.2} parent=27 // pred_check
        %p509 = pneg %p124
      $region38: #{generator_block_forward.2} parent=27 // pred_check_branch
        %511 = sbr.rel (%p509) target = $region40
      $region39: #{generator_block_forward.2} parent=27 // pred_region
        _
      $region40: #{generator_block_forward.2} parent=27 // pred_fallthru
        _
    $region28: #{generator_block_forward.2} parent=5 // pred_fallthru
      _
    %p512 = scmp.le.s32.totalorder 2, %s10
    // Predicated region
    $region41: #{generator_block_forward.2} parent=5 // pred_check
      %p513 = pneg %p512
    $region42: #{generator_block_forward.2} parent=5 // pred_check_branch
      %515 = sbr.rel (%p513) target = $region44
    $region43: #{generator_block_forward.2} parent=5 // pred_region
      %s516 = ssub.s32 %s10, 2
      // Predicated region
      $region45: #{generator_block_forward.2} parent=43 // pred_check
        %p517 = pneg %p104
      $region46: #{generator_block_forward.2} parent=43 // pred_check_branch
        %519 = sbr.rel (%p517) target = $region48
      $region47: #{generator_block_forward.2} parent=43 // pred_region
        %p520 = scmp.lt.s32.totalorder %s21, 1
        %s521 = scalar_select %p520, %s21, 1
        %s522 = smul.addr %s521, 8
        %s523 = smul.addr %s522, 8
        %s524 = scalar_lea.vmem %s2, %s523
      $region48: #{generator_block_forward.2} parent=43 // pred_fallthru
        _
      // Predicated region
      $region49: #{generator_block_forward.2} parent=43 // pred_check
        %p525 = pneg %p130
      $region50: #{generator_block_forward.2} parent=43 // pred_check_branch
        %527 = sbr.rel (%p525) target = $region52
      $region51: #{generator_block_forward.2} parent=43 // pred_region
        %p528 = scmp.lt.s32.totalorder %s21, 1
        %s529 = scalar_select %p528, %s21, 1
        %s530 = smul.addr %s529, 8
        %s531 = smul.addr %s530, 8
        %s532 = scalar_lea.vmem %s3, %s531
      $region52: #{generator_block_forward.2} parent=43 // pred_fallthru
        _
    $region44: #{generator_block_forward.2} parent=5 // pred_fallthru
      _
  $region6: #{generator_block_forward.2} parent=0 // loop_footer
    %s14 = sadd.s32 1, %s10
  $region7: #{generator_block_forward.2} parent=0 // loop_footer_branch
    %9 = sbr.rel target = $region3
  $region8: #{generator_block_forward.2} parent=0 // loop_exit
    _

// kernel: generator_block_forward.3
$region0: #{generator_block_forward.3}
  #allocation0 [shape = 'u32[]', space=smem, size = 0x4, offset = 0x4, fixed_abs, tag = 'smem constant byte address 0x4 - core index']
  #allocation1 [shape = 'u32[72,128]{1,0:T(1,128)}', space=vmem, size = 0x9000, scoped, tag = 'internal scratch']
  %s0 = inlined_call_operand.vmem [shape: bf16[32,250], index: 0, kind: input, shape index: {}]
  %s1 = inlined_call_operand.vmem [shape: bf16[64,32], index: 1, kind: input, shape index: {}]
  %s2 = inlined_call_operand.vmem [shape: f32[64,1], index: 2, kind: input, shape index: {}]
  %s3 = inlined_call_operand.vmem [shape: f32[64,1], index: 3, kind: input, shape index: {}]
  %s4 = inlined_call_operand.vmem [shape: bf16[64,250], index: 4, kind: output, shape index: {}]
  %s5 = sld [smem:[#allocation0]]
  $region127: #{generator_block_forward.3} parent=0
    _
  %s7 = ssub.s32 1, %s5
  %s8 = scalar_select 0, %s7, %s5
  $region1: #{generator_block_forward.3} parent=0
    #allocation2 [shape = 'u8[16384]{0}', space=vmem, size = 0x4000, scoped, tag = 'input window, operand 0']
    #allocation3 [shape = 'u8[32768]{0}', space=vmem, size = 0x8000, scoped, tag = 'output window, operand 0']
    loop: start=0, step=1, limit=4
    $region2: #{generator_block_forward.3} parent=1 // loop_pre_header
      _
    $region3: #{generator_block_forward.3} parent=1 // loop_header
      %s10 = sphi 0, %s14
      %p11 = scmp.ge.s32.totalorder %s10, 4
      %s20 = sphi 0, %s22
      %s23 = sphi 0, %s20
      %s24 = sphi 0, %s23
      %s40 = sphi 0, %s24
      %s44 = sphi 0, %s44
      %s46 = sphi 0, %s44
      %s47 = sphi 0, %s46
      %s61 = sphi 0, %s47
      %s65 = sphi 0, %s65
      %s67 = sphi 0, %s65
      %s68 = sphi 0, %s67
      %s82 = sphi 0, %s68
      %s86 = sphi 0, %s86
      %s88 = sphi 0, %s86
      %s89 = sphi 0, %s88
      %s103 = sphi 0, %s89
      %s109 = sphi 0, %s111
      %s112 = sphi 0, %s109
      %s113 = sphi 0, %s112
      %s129 = sphi 0, %s113
    $region4: #{generator_block_forward.3} parent=1 // loop_header_branch
      %13 = sbr.rel (%p11) target = $region8
    $region5: #{generator_block_forward.3} parent=1 // loop_body
      %s15 = ssub.s32 %s10, 1
      %s16 = ssub.s32 %s10, 2
      %s17 = sadd.s32 %s10, 1
      %s18 = ssub.s32 %s10, %s17
      %p19 = scmp.eq.s32.totalorder %s18, 0
      %s21 = sadd.s32 %s20, 1
      %s22 = scalar_select %p19, %s20, %s21
      %p25 = pneg %p19
      %p26 = scmp.eq.s32.totalorder %s10, 1
      %p27 = por %p25, %p26
      %p28 = scmp.ne.s32.totalorder %s20, %s23
      %p29 = scmp.eq.s32.totalorder %s10, 0
      %p30 = por %p28, %p29
      %p31 = scmp.ne.s32.totalorder %s20, %s23
      %p32 = scmp.eq.s32.totalorder %s15, 1
      %p33 = por %p31, %p32
      %p34 = scmp.ne.s32.totalorder %s23, %s24
      %p35 = scmp.eq.s32.totalorder %s15, 0
      %p36 = por %p34, %p35
      %p37 = scmp.ne.s32.totalorder %s23, %s24
      %p38 = scmp.eq.s32.totalorder %s16, 1
      %p39 = por %p37, %p38
      %p41 = scmp.ne.s32.totalorder %s24, %s40
      %p42 = scmp.eq.s32.totalorder %s16, 0
      %p43 = por %p41, %p42
      %s45 = sadd.s32 %s44, 1
      %p48 = scmp.eq.s32.totalorder %s10, 1
      %p49 = scmp.ne.s32.totalorder %s44, %s46
      %p50 = scmp.eq.s32.totalorder %s10, 0
      %p51 = por %p49, %p50
      %p52 = scmp.ne.s32.totalorder %s44, %s46
      %p53 = scmp.eq.s32.totalorder %s15, 1
      %p54 = por %p52, %p53
      %p55 = scmp.ne.s32.totalorder %s46, %s47
      %p56 = scmp.eq.s32.totalorder %s15, 0
      %p57 = por %p55, %p56
      %p58 = scmp.ne.s32.totalorder %s46, %s47
      %p59 = scmp.eq.s32.totalorder %s16, 1
      %p60 = por %p58, %p59
      %p62 = scmp.ne.s32.totalorder %s47, %s61
      %p63 = scmp.eq.s32.totalorder %s16, 0
      %p64 = por %p62, %p63
      %s66 = sadd.s32 %s65, 1
      %p69 = scmp.eq.s32.totalorder %s10, 1
      %p70 = scmp.ne.s32.totalorder %s65, %s67
      %p71 = scmp.eq.s32.totalorder %s10, 0
      %p72 = por %p70, %p71
      %p73 = scmp.ne.s32.totalorder %s65, %s67
      %p74 = scmp.eq.s32.totalorder %s15, 1
      %p75 = por %p73, %p74
      %p76 = scmp.ne.s32.totalorder %s67, %s68
      %p77 = scmp.eq.s32.totalorder %s15, 0
      %p78 = por %p76, %p77
      %p79 = scmp.ne.s32.totalorder %s67, %s68
      %p80 = scmp.eq.s32.totalorder %s16, 1
      %p81 = por %p79, %p80
      %p83 = scmp.ne.s32.totalorder %s68, %s82
      %p84 = scmp.eq.s32.totalorder %s16, 0
      %p85 = por %p83, %p84
      %s87 = sadd.s32 %s86, 1
      %p90 = scmp.eq.s32.totalorder %s10, 1
      %p91 = scmp.ne.s32.totalorder %s86, %s88
      %p92 = scmp.eq.s32.totalorder %s10, 0
      %p93 = por %p91, %p92
      %p94 = scmp.ne.s32.totalorder %s86, %s88
      %p95 = scmp.eq.s32.totalorder %s15, 1
      %p96 = por %p94, %p95
      %p97 = scmp.ne.s32.totalorder %s88, %s89
      %p98 = scmp.eq.s32.totalorder %s15, 0
      %p99 = por %p97, %p98
      %p100 = scmp.ne.s32.totalorder %s88, %s89
      %p101 = scmp.eq.s32.totalorder %s16, 1
      %p102 = por %p100, %p101
      %p104 = scmp.ne.s32.totalorder %s89, %s103
      %p105 = scmp.eq.s32.totalorder %s16, 0
      %p106 = por %p104, %p105
      %s107 = ssub.s32 %s10, %s17
      %p108 = scmp.eq.s32.totalorder %s107, 0
      %s110 = sadd.s32 %s109, 1
      %s111 = scalar_select %p108, %s109, %s110
      %p114 = pneg %p108
      %p115 = scmp.eq.s32.totalorder %s10, 1
      %p116 = por %p114, %p115
      %p117 = scmp.ne.s32.totalorder %s109, %s112
      %p118 = scmp.eq.s32.totalorder %s10, 0
      %p119 = por %p117, %p118
      %p120 = scmp.ne.s32.totalorder %s109, %s112
      %p121 = scmp.eq.s32.totalorder %s15, 1
      %p122 = por %p120, %p121
      %p123 = scmp.ne.s32.totalorder %s112, %s113
      %p124 = scmp.eq.s32.totalorder %s15, 0
      %p125 = por %p123, %p124
      %p126 = scmp.ne.s32.totalorder %s112, %s113
      %p127 = scmp.eq.s32.totalorder %s16, 1
      %p128 = por %p126, %p127
      %p130 = scmp.ne.s32.totalorder %s113, %s129
      %p131 = scmp.eq.s32.totalorder %s16, 0
      %p132 = por %p130, %p131
      %p133 = scmp.le.s32.totalorder 1, %s10
      %p134 = scmp.lt.s32.totalorder %s10, 3
      %p135 = pnand %p133, %p134
      %p136 = pneg %p135
      // Predicated region
      $region9: #{generator_block_forward.3} parent=5 // pred_check
        _
      $region10: #{generator_block_forward.3} parent=5 // pred_check_branch
        %138 = sbr.rel (%p135) target = $region12
      $region11: #{generator_block_forward.3} parent=5 // pred_region
        %s139 = ssub.s32 %s10, 1
        // Predicated region
        $region13: #{generator_block_forward.3} parent=11 // pred_check
          %p140 = pneg %p57
        $region14: #{generator_block_forward.3} parent=11 // pred_check_branch
          %142 = sbr.rel (%p140) target = $region16
        $region15: #{generator_block_forward.3} parent=11 // pred_region
          _
        $region16: #{generator_block_forward.3} parent=11 // pred_fallthru
          _
        // Predicated region
        $region17: #{generator_block_forward.3} parent=11 // pred_check
          %p143 = pneg %p78
        $region18: #{generator_block_forward.3} parent=11 // pred_check_branch
          %145 = sbr.rel (%p143) target = $region20
        $region19: #{generator_block_forward.3} parent=11 // pred_region
          _
        $region20: #{generator_block_forward.3} parent=11 // pred_fallthru
          _
        // Predicated region
        $region21: #{generator_block_forward.3} parent=11 // pred_check
          %p146 = pneg %p99
        $region22: #{generator_block_forward.3} parent=11 // pred_check_branch
          %148 = sbr.rel (%p146) target = $region24
        $region23: #{generator_block_forward.3} parent=11 // pred_region
          _
        $region24: #{generator_block_forward.3} parent=11 // pred_fallthru
          _
      $region12: #{generator_block_forward.3} parent=5 // pred_fallthru
        _
      %p149 = scmp.lt.s32.totalorder %s10, 2
      // Predicated region
      $region25: #{generator_block_forward.3} parent=5 // pred_check
        %p150 = pneg %p149
      $region26: #{generator_block_forward.3} parent=5 // pred_check_branch
        %152 = sbr.rel (%p150) target = $region28
      $region27: #{generator_block_forward.3} parent=5 // pred_region
        // Predicated region
        $region29: #{generator_block_forward.3} parent=27 // pred_check
          %p153 = pneg %p30
        $region30: #{generator_block_forward.3} parent=27 // pred_check_branch
          %155 = sbr.rel (%p153) target = $region32
        $region31: #{generator_block_forward.3} parent=27 // pred_region
          %s156 = sand.u32 %s20, 1
          %s157 = sand.u32 %s20, 1
          %s158 = smul.addr %s157, 16
          %s159 = scalar_lea.vmem [#allocation2], %s158
          %s160 = smul.addr %s10, 4
          %s161 = scalar_lea.vmem %s0, %s160
          // Predicated region
          $region33: #{generator_block_forward.3} parent=31 // pred_check
            _
          $region34: #{generator_block_forward.3} parent=31 // pred_check_branch
            %163 = sbr.rel (0) target = $region36
          $region35: #{generator_block_forward.3} parent=31 // pred_region
            // Predicated region
            $region37: #{generator_block_forward.3} parent=35 // pred_check
              _
            $region38: #{generator_block_forward.3} parent=35 // pred_check_branch
              %165 = sbr.rel target = $region40
            $region39: #{generator_block_forward.3} parent=35 // pred_region
              // Predicated region
              $region52: #{generator_block_forward.3} parent=39 // pred_check
                _
              $region53: #{generator_block_forward.3} parent=39 // pred_check_branch
                %187 = sbr.rel (0) target = $region55
              $region54: #{generator_block_forward.3} parent=39 // pred_region
                loop: start=0, step=1, limit=1
                $region56: #{generator_block_forward.3} parent=54 // loop_pre_header
                  _
                $region57: #{generator_block_forward.3} parent=54 // loop_header
                  %s189 = sphi 0, %s193
                  %p190 = scmp.ge.s32.totalorder %s189, 1
                  %s194 = sphi %s161, %s161
                  %s195 = sphi %s159, %s159
                $region58: #{generator_block_forward.3} parent=54 // loop_header_branch
                  %192 = sbr.rel (%p190) target = $region62
                $region59: #{generator_block_forward.3} parent=54 // loop_body
                  _
                $region60: #{generator_block_forward.3} parent=54 // loop_footer
                  %s193 = sadd.s32 1, %s189
                $region61: #{generator_block_forward.3} parent=54 // loop_footer_branch
                  %188 = sbr.rel target = $region57
                $region62: #{generator_block_forward.3} parent=54 // loop_exit
                  _
                %s197 = ssub.s32 16, 1
                loop: start=0, step=1, limit=1
                $region63: #{generator_block_forward.3} parent=54 // loop_pre_header
                  _
                $region64: #{generator_block_forward.3} parent=54 // loop_header
                  %s199 = sphi 0, %s203
                  %p200 = scmp.ge.s32.totalorder %s199, 1
                  %s204 = sphi %s161, %s161
                  %s205 = sphi %s159, %s159
                $region65: #{generator_block_forward.3} parent=54 // loop_header_branch
                  %202 = sbr.rel (%p200) target = $region69
                $region66: #{generator_block_forward.3} parent=54 // loop_body
                  %v206 = vld [vmem:[%s204] sm:%s197]
                  %207 = vst [vmem:[%s205] sm:%s197] %v206
                  %v208 = vld [vmem:[%s204 + $0x8] sm:%s197]
                  %209 = vst [vmem:[%s205 + $0x4] sm:%s197] %v208
                  %v210 = vld [vmem:[%s204 + $0x10] sm:%s197]
                  %211 = vst [vmem:[%s205 + $0x8] sm:%s197] %v210
                  %v212 = vld [vmem:[%s204 + $0x18] sm:%s197]
                  %213 = vst [vmem:[%s205 + $0xc] sm:%s197] %v212
                $region67: #{generator_block_forward.3} parent=54 // loop_footer
                  %s203 = sadd.s32 1, %s199
                $region68: #{generator_block_forward.3} parent=54 // loop_footer_branch
                  %198 = sbr.rel target = $region64
                $region69: #{generator_block_forward.3} parent=54 // loop_exit
                  _
              $region55: #{generator_block_forward.3} parent=39 // pred_fallthru
                _
            $region40: #{generator_block_forward.3} parent=35 // pred_fallthru
              _
            // Predicated region
            $region41: #{generator_block_forward.3} parent=35 // pred_check
              _
            $region42: #{generator_block_forward.3} parent=35 // pred_check_branch
              %167 = sbr.rel (0) target = $region44
            $region43: #{generator_block_forward.3} parent=35 // pred_region
              %s169 = ssub.s32 16, 1
              loop: start=0, step=1, limit=1
              $region45: #{generator_block_forward.3} parent=43 // loop_pre_header
                _
              $region46: #{generator_block_forward.3} parent=43 // loop_header
                %s171 = sphi 0, %s175
                %p172 = scmp.ge.s32.totalorder %s171, 1
                %s176 = sphi %s161, %s161
                %s177 = sphi %s159, %s159
              $region47: #{generator_block_forward.3} parent=43 // loop_header_branch
                %174 = sbr.rel (%p172) target = $region51
              $region48: #{generator_block_forward.3} parent=43 // loop_body
                %v178 = vld [vmem:[%s176] sm:%s169]
                %179 = vst [vmem:[%s177] sm:%s169] %v178
                %v180 = vld [vmem:[%s176 + $0x8] sm:%s169]
                %181 = vst [vmem:[%s177 + $0x4] sm:%s169] %v180
                %v182 = vld [vmem:[%s176 + $0x10] sm:%s169]
                %183 = vst [vmem:[%s177 + $0x8] sm:%s169] %v182
                %v184 = vld [vmem:[%s176 + $0x18] sm:%s169]
                %185 = vst [vmem:[%s177 + $0xc] sm:%s169] %v184
              $region49: #{generator_block_forward.3} parent=43 // loop_footer
                %s175 = sadd.s32 1, %s171
              $region50: #{generator_block_forward.3} parent=43 // loop_footer_branch
                %170 = sbr.rel target = $region46
              $region51: #{generator_block_forward.3} parent=43 // loop_exit
                _
            $region44: #{generator_block_forward.3} parent=35 // pred_fallthru
              _
          $region36: #{generator_block_forward.3} parent=31 // pred_fallthru
            _
          %214 = vnop
        $region32: #{generator_block_forward.3} parent=27 // pred_fallthru
          _
      $region28: #{generator_block_forward.3} parent=5 // pred_fallthru
        _
      %p215 = scmp.le.s32.totalorder 1, %s10
      %p216 = scmp.lt.s32.totalorder %s10, 3
      %p217 = pnand %p215, %p216
      %p218 = pneg %p217
      // Predicated region
      $region70: #{generator_block_forward.3} parent=5 // pred_check
        _
      $region71: #{generator_block_forward.3} parent=5 // pred_check_branch
        %220 = sbr.rel (%p217) target = $region73
      $region72: #{generator_block_forward.3} parent=5 // pred_region
        %s221 = ssub.s32 %s10, 1
        %s222 = sand.u32 %s23, 1
        %s223 = sand.u32 %s23, 1
        %s224 = smul.addr %s223, 16
        %s225 = scalar_lea.vmem [#allocation2], %s224
        // Predicated region
        $region74: #{generator_block_forward.3} parent=72 // pred_check
          %p226 = pneg %p36
        $region75: #{generator_block_forward.3} parent=72 // pred_check_branch
          %228 = sbr.rel (%p226) target = $region77
        $region76: #{generator_block_forward.3} parent=72 // pred_region
          _
        $region77: #{generator_block_forward.3} parent=72 // pred_fallthru
          _
        %s229 = sand.u32 %s23, 1
        %s230 = sand.u32 %s23, 1
        %s231 = smul.addr %s230, 16
        %s232 = scalar_lea.vmem [#allocation2], %s231
        %p233 = pneg %p36
        %p234 = pneg %p33
        %p235 = pneg %p57
        %p236 = pneg %p54
        %p237 = pneg %p78
        %p238 = pneg %p75
        %p239 = pneg %p99
        %p240 = pneg %p96
        %p241 = pneg %p125
        %p242 = pneg %p122
        %s243 = sand.u32 %s112, 1
        %s244 = sand.u32 %s112, 1
        %s245 = smul.addr %s244, 32
        %s246 = scalar_lea.vmem [#allocation3], %s245
        %v248 = vld [vmem:[%s1] sm:$0xf]
        %v249 = vld [vmem:[%s1 + $0x4] sm:$0xf]
        %v250 = vld [vmem:[%s1 + $0x8] sm:$0xf]
        %v251 = vld [vmem:[%s1 + $0xc] sm:$0xf]
        %v252 = vld [vmem:[%s1 + $0x10] sm:$0xf]
        %v253 = vld [vmem:[%s1 + $0x14] sm:$0xf]
        %v254 = vld [vmem:[%s1 + $0x18] sm:$0xf]
        %v255 = vld [vmem:[%s1 + $0x1c] sm:$0xf]
        %v256 = vld [vmem:[%s225] sm:$0xf]
        %v257 = vld [vmem:[%s225 + $0x4] sm:$0xf]
        %v258 = vld [vmem:[%s225 + $0x8] sm:$0xf]
        %v259 = vld [vmem:[%s225 + $0xc] sm:$0xf]
        %v268 = vunpack.c.l.b16 %v248
        %v269 = vunpack.c.l.b16 %v249
        %v270 = vunpack.c.l.b16 %v250
        %v271 = vunpack.c.l.b16 %v251
        %v272 = vunpack.c.l.b16 %v252
        %v273 = vunpack.c.l.b16 %v253
        %v274 = vunpack.c.l.b16 %v254
        %v275 = vunpack.c.l.b16 %v255
        %v276 = vpack.c.b16 %v269, %v268
        %v277 = vpack.c.b16 %v271, %v270
        %v278 = vpack.c.b16 %v273, %v272
        %v279 = vpack.c.b16 %v275, %v274
        %v284 = vunpack.c.l.b16 %v256
        %v285 = vunpack.c.l.b16 %v257
        %v286 = vunpack.c.l.b16 %v258
        %v287 = vunpack.c.l.b16 %v259
        %v288 = vpack.c.b16 %v285, %v284
        %v289 = vpack.c.b16 %v287, %v286
        %vm292 = vcmask 261120
        %v294 = vsel %vm292, %v276, 0
        %v297 = vsel %vm292, %v277, 0
        %v300 = vsel %vm292, %v278, 0
        %v303 = vsel %vm292, %v279, 0
        %305 = vmatpush.bf16.msra.mxu0 0
        %306 = vmatpush.bf16.msra.mxu0 0
        %307 = vmatpush.bf16.msra.mxu0 0
        %308 = vmatpush.bf16.msra.mxu0 0
        %309 = vmatpush.bf16.msra.mxu0 0
        %310 = vmatpush.bf16.msra.mxu0 0
        %311 = vmatpush.bf16.msra.mxu0 %v289
        %312 = vmatpush.bf16.msra.mxu0 %v288
        %313 = vmatmul.bf16.gmra.mxu0 %v294
        %v314 = vpop.f32.mrf.mxu0
        %v315 = vadd.f32 0.0, %v314
        %v316 = vpop.f32.mrf.mxu0
        %v317 = vadd.f32 0.0, %v316
        %318 = vmatmul.bf16.gmra.mxu0 %v297
        %v319 = vpop.f32.mrf.mxu0
        %v320 = vadd.f32 0.0, %v319
        %v321 = vpop.f32.mrf.mxu0
        %v322 = vadd.f32 0.0, %v321
        %323 = vmatmul.bf16.gmra.mxu0 %v300
        %v324 = vpop.f32.mrf.mxu0
        %v325 = vadd.f32 0.0, %v324
        %v326 = vpop.f32.mrf.mxu0
        %v327 = vadd.f32 0.0, %v326
        %328 = vmatmul.bf16.gmra.mxu0 %v303
        %v329 = vpop.f32.mrf.mxu0
        %v330 = vadd.f32 0.0, %v329
        %v331 = vpop.f32.mrf.mxu0
        %v332 = vadd.f32 0.0, %v331
        %333 = vdwg.mxu0
        %v334 = vld [vmem:[%s2] sm:$0xff]
        %v335 = vld [vmem:[%s2 + $0x8] sm:$0xff]
        %v336 = vld [vmem:[%s2 + $0x10] sm:$0xff]
        %v337 = vld [vmem:[%s2 + $0x18] sm:$0xff]
        %v338 = vld [vmem:[%s2 + $0x20] sm:$0xff]
        %v339 = vld [vmem:[%s2 + $0x28] sm:$0xff]
        %v340 = vld [vmem:[%s2 + $0x30] sm:$0xff]
        %v341 = vld [vmem:[%s2 + $0x38] sm:$0xff]
        %343 = vset.pattern.permute.xlu0 0
        %344 = vperm.xlu0 %343, %v334
        %v345 = vpop.permute.xlu0 %344
        %348 = vset.pattern.permute.xlu0 0
        %349 = vperm.xlu0 %348, %v335
        %v350 = vpop.permute.xlu0 %349
        %353 = vset.pattern.permute.xlu0 0
        %354 = vperm.xlu0 %353, %v336
        %v355 = vpop.permute.xlu0 %354
        %358 = vset.pattern.permute.xlu0 0
        %359 = vperm.xlu0 %358, %v337
        %v360 = vpop.permute.xlu0 %359
        %363 = vset.pattern.permute.xlu0 0
        %364 = vperm.xlu0 %363, %v338
        %v365 = vpop.permute.xlu0 %364
        %368 = vset.pattern.permute.xlu0 0
        %369 = vperm.xlu0 %368, %v339
        %v370 = vpop.permute.xlu0 %369
        %373 = vset.pattern.permute.xlu0 0
        %374 = vperm.xlu0 %373, %v340
        %v375 = vpop.permute.xlu0 %374
        %378 = vset.pattern.permute.xlu0 0
        %379 = vperm.xlu0 %378, %v341
        %v380 = vpop.permute.xlu0 %379
        %v382 = vmul.f32 %v315, %v345
        %v383 = vmul.f32 %v317, %v350
        %v384 = vmul.f32 %v320, %v355
        %v385 = vmul.f32 %v322, %v360
        %v386 = vmul.f32 %v325, %v365
        %v387 = vmul.f32 %v327, %v370
        %v388 = vmul.f32 %v330, %v375
        %v389 = vmul.f32 %v332, %v380
        %v390 = vld [vmem:[%s3] sm:$0xff]
        %v391 = vld [vmem:[%s3 + $0x8] sm:$0xff]
        %v392 = vld [vmem:[%s3 + $0x10] sm:$0xff]
        %v393 = vld [vmem:[%s3 + $0x18] sm:$0xff]
        %v394 = vld [vmem:[%s3 + $0x20] sm:$0xff]
        %v395 = vld [vmem:[%s3 + $0x28] sm:$0xff]
        %v396 = vld [vmem:[%s3 + $0x30] sm:$0xff]
        %v397 = vld [vmem:[%s3 + $0x38] sm:$0xff]
        %399 = vset.pattern.permute.xlu0 0
        %400 = vperm.xlu0 %399, %v390
        %v401 = vpop.permute.xlu0 %400
        %404 = vset.pattern.permute.xlu0 0
        %405 = vperm.xlu0 %404, %v391
        %v406 = vpop.permute.xlu0 %405
        %409 = vset.pattern.permute.xlu0 0
        %410 = vperm.xlu0 %409, %v392
        %v411 = vpop.permute.xlu0 %410
        %414 = vset.pattern.permute.xlu0 0
        %415 = vperm.xlu0 %414, %v393
        %v416 = vpop.permute.xlu0 %415
        %419 = vset.pattern.permute.xlu0 0
        %420 = vperm.xlu0 %419, %v394
        %v421 = vpop.permute.xlu0 %420
        %424 = vset.pattern.permute.xlu0 0
        %425 = vperm.xlu0 %424, %v395
        %v426 = vpop.permute.xlu0 %425
        %429 = vset.pattern.permute.xlu0 0
        %430 = vperm.xlu0 %429, %v396
        %v431 = vpop.permute.xlu0 %430
        %434 = vset.pattern.permute.xlu0 0
        %435 = vperm.xlu0 %434, %v397
        %v436 = vpop.permute.xlu0 %435
        %v438 = vadd.f32 %v382, %v401
        %v439 = vadd.f32 %v383, %v406
        %v440 = vadd.f32 %v384, %v411
        %v441 = vadd.f32 %v385, %v416
        %v442 = vadd.f32 %v386, %v421
        %v443 = vadd.f32 %v387, %v426
        %v444 = vadd.f32 %v388, %v431
        %v445 = vadd.f32 %v389, %v436
        %v446 = vmax.f32 %v438, 0.0
        %v447 = vmax.f32 %v439, 0.0
        %v448 = vmax.f32 %v440, 0.0
        %v449 = vmax.f32 %v441, 0.0
        %v450 = vmax.f32 %v442, 0.0
        %v451 = vmax.f32 %v443, 0.0
        %v452 = vmax.f32 %v444, 0.0
        %v453 = vmax.f32 %v445, 0.0
        %v454 = vpack.c.bf16 %v446, %v446
        %v455 = vpack.c.bf16 %v447, %v447
        %v456 = vpack.c.bf16 %v448, %v448
        %v457 = vpack.c.bf16 %v449, %v449
        %v458 = vpack.c.bf16 %v450, %v450
        %v459 = vpack.c.bf16 %v451, %v451
        %v460 = vpack.c.bf16 %v452, %v452
        %v461 = vpack.c.bf16 %v453, %v453
        %462 = vst [vmem:[%s246] sm:$0xf] %v454
        %463 = vst [vmem:[%s246 + $0x4] sm:$0xf] %v455
        %464 = vst [vmem:[%s246 + $0x8] sm:$0xf] %v456
        %465 = vst [vmem:[%s246 + $0xc] sm:$0xf] %v457
        %466 = vst [vmem:[%s246 + $0x10] sm:$0xf] %v458
        %467 = vst [vmem:[%s246 + $0x14] sm:$0xf] %v459
        %468 = vst [vmem:[%s246 + $0x18] sm:$0xf] %v460
        %469 = vst [vmem:[%s246 + $0x1c] sm:$0xf] %v461
        %s470 = sand.u32 %s112, 1
        %s471 = sand.u32 %s112, 1
        %s472 = smul.addr %s471, 32
        %s473 = scalar_lea.vmem [#allocation3], %s472
        // Predicated region
        $region78: #{generator_block_forward.3} parent=72 // pred_check
          %p474 = pneg %p122
        $region79: #{generator_block_forward.3} parent=72 // pred_check_branch
          %476 = sbr.rel (%p474) target = $region81
        $region80: #{generator_block_forward.3} parent=72 // pred_region
          %s477 = smul.addr %s15, 4
          %s478 = scalar_lea.vmem %s4, %s477
          // Predicated region
          $region82: #{generator_block_forward.3} parent=80 // pred_check
            _
          $region83: #{generator_block_forward.3} parent=80 // pred_check_branch
            %480 = sbr.rel (0) target = $region85
          $region84: #{generator_block_forward.3} parent=80 // pred_region
            // Predicated region
            $region86: #{generator_block_forward.3} parent=84 // pred_check
              _
            $region87: #{generator_block_forward.3} parent=84 // pred_check_branch
              %482 = sbr.rel target = $region89
            $region88: #{generator_block_forward.3} parent=84 // pred_region
              // Predicated region
              $region101: #{generator_block_forward.3} parent=88 // pred_check
                _
              $region102: #{generator_block_forward.3} parent=88 // pred_check_branch
                %512 = sbr.rel (0) target = $region104
              $region103: #{generator_block_forward.3} parent=88 // pred_region
                loop: start=0, step=1, limit=1
                $region105: #{generator_block_forward.3} parent=103 // loop_pre_header
                  _
                $region106: #{generator_block_forward.3} parent=103 // loop_header
                  %s514 = sphi 0, %s518
                  %p515 = scmp.ge.s32.totalorder %s514, 1
                  %s519 = sphi %s473, %s473
                  %s520 = sphi %s478, %s478
                $region107: #{generator_block_forward.3} parent=103 // loop_header_branch
                  %517 = sbr.rel (%p515) target = $region111
                $region108: #{generator_block_forward.3} parent=103 // loop_body
                  _
                $region109: #{generator_block_forward.3} parent=103 // loop_footer
                  %s518 = sadd.s32 1, %s514
                $region110: #{generator_block_forward.3} parent=103 // loop_footer_branch
                  %513 = sbr.rel target = $region106
                $region111: #{generator_block_forward.3} parent=103 // loop_exit
                  _
                %s522 = ssub.s32 16, 1
                loop: start=0, step=1, limit=1
                $region112: #{generator_block_forward.3} parent=103 // loop_pre_header
                  _
                $region113: #{generator_block_forward.3} parent=103 // loop_header
                  %s524 = sphi 0, %s528
                  %p525 = scmp.ge.s32.totalorder %s524, 1
                  %s529 = sphi %s473, %s473
                  %s530 = sphi %s478, %s478
                $region114: #{generator_block_forward.3} parent=103 // loop_header_branch
                  %527 = sbr.rel (%p525) target = $region118
                $region115: #{generator_block_forward.3} parent=103 // loop_body
                  %v531 = vld [vmem:[%s529] sm:%s522]
                  %532 = vst [vmem:[%s530] sm:%s522] %v531
                  %v533 = vld [vmem:[%s529 + $0x4] sm:%s522]
                  %534 = vst [vmem:[%s530 + $0x8] sm:%s522] %v533
                  %v535 = vld [vmem:[%s529 + $0x8] sm:%s522]
                  %536 = vst [vmem:[%s530 + $0x10] sm:%s522] %v535
                  %v537 = vld [vmem:[%s529 + $0xc] sm:%s522]
                  %538 = vst [vmem:[%s530 + $0x18] sm:%s522] %v537
                  %v539 = vld [vmem:[%s529 + $0x10] sm:%s522]
                  %540 = vst [vmem:[%s530 + $0x20] sm:%s522] %v539
                  %v541 = vld [vmem:[%s529 + $0x14] sm:%s522]
                  %542 = vst [vmem:[%s530 + $0x28] sm:%s522] %v541
                  %v543 = vld [vmem:[%s529 + $0x18] sm:%s522]
                  %544 = vst [vmem:[%s530 + $0x30] sm:%s522] %v543
                  %v545 = vld [vmem:[%s529 + $0x1c] sm:%s522]
                  %546 = vst [vmem:[%s530 + $0x38] sm:%s522] %v545
                $region116: #{generator_block_forward.3} parent=103 // loop_footer
                  %s528 = sadd.s32 1, %s524
                $region117: #{generator_block_forward.3} parent=103 // loop_footer_branch
                  %523 = sbr.rel target = $region113
                $region118: #{generator_block_forward.3} parent=103 // loop_exit
                  _
              $region104: #{generator_block_forward.3} parent=88 // pred_fallthru
                _
            $region89: #{generator_block_forward.3} parent=84 // pred_fallthru
              _
            // Predicated region
            $region90: #{generator_block_forward.3} parent=84 // pred_check
              _
            $region91: #{generator_block_forward.3} parent=84 // pred_check_branch
              %484 = sbr.rel (0) target = $region93
            $region92: #{generator_block_forward.3} parent=84 // pred_region
              %s486 = ssub.s32 16, 1
              loop: start=0, step=1, limit=1
              $region94: #{generator_block_forward.3} parent=92 // loop_pre_header
                _
              $region95: #{generator_block_forward.3} parent=92 // loop_header
                %s488 = sphi 0, %s492
                %p489 = scmp.ge.s32.totalorder %s488, 1
                %s493 = sphi %s473, %s473
                %s494 = sphi %s478, %s478
              $region96: #{generator_block_forward.3} parent=92 // loop_header_branch
                %491 = sbr.rel (%p489) target = $region100
              $region97: #{generator_block_forward.3} parent=92 // loop_body
                %v495 = vld [vmem:[%s493] sm:%s486]
                %496 = vst [vmem:[%s494] sm:%s486] %v495
                %v497 = vld [vmem:[%s493 + $0x4] sm:%s486]
                %498 = vst [vmem:[%s494 + $0x8] sm:%s486] %v497
                %v499 = vld [vmem:[%s493 + $0x8] sm:%s486]
                %500 = vst [vmem:[%s494 + $0x10] sm:%s486] %v499
                %v501 = vld [vmem:[%s493 + $0xc] sm:%s486]
                %502 = vst [vmem:[%s494 + $0x18] sm:%s486] %v501
                %v503 = vld [vmem:[%s493 + $0x10] sm:%s486]
                %504 = vst [vmem:[%s494 + $0x20] sm:%s486] %v503
                %v505 = vld [vmem:[%s493 + $0x14] sm:%s486]
                %506 = vst [vmem:[%s494 + $0x28] sm:%s486] %v505
                %v507 = vld [vmem:[%s493 + $0x18] sm:%s486]
                %508 = vst [vmem:[%s494 + $0x30] sm:%s486] %v507
                %v509 = vld [vmem:[%s493 + $0x1c] sm:%s486]
                %510 = vst [vmem:[%s494 + $0x38] sm:%s486] %v509
              $region98: #{generator_block_forward.3} parent=92 // loop_footer
                %s492 = sadd.s32 1, %s488
              $region99: #{generator_block_forward.3} parent=92 // loop_footer_branch
                %487 = sbr.rel target = $region95
              $region100: #{generator_block_forward.3} parent=92 // loop_exit
                _
            $region93: #{generator_block_forward.3} parent=84 // pred_fallthru
              _
          $region85: #{generator_block_forward.3} parent=80 // pred_fallthru
            _
          %547 = vnop
        $region81: #{generator_block_forward.3} parent=72 // pred_fallthru
          _
      $region73: #{generator_block_forward.3} parent=5 // pred_fallthru
        _
      %p548 = scmp.le.s32.totalorder 2, %s10
      // Predicated region
      $region119: #{generator_block_forward.3} parent=5 // pred_check
        %p549 = pneg %p548
      $region120: #{generator_block_forward.3} parent=5 // pred_check_branch
        %551 = sbr.rel (%p549) target = $region122
      $region121: #{generator_block_forward.3} parent=5 // pred_region
        %s552 = ssub.s32 %s10, 2
        // Predicated region
        $region123: #{generator_block_forward.3} parent=121 // pred_check
          %p553 = pneg %p128
        $region124: #{generator_block_forward.3} parent=121 // pred_check_branch
          %555 = sbr.rel (%p553) target = $region126
        $region125: #{generator_block_forward.3} parent=121 // pred_region
          %s556 = sand.u32 %s113, 1
          %s557 = sand.u32 %s113, 1
          %s558 = smul.addr %s557, 32
          %s559 = scalar_lea.vmem [#allocation3], %s558
        $region126: #{generator_block_forward.3} parent=121 // pred_fallthru
          _
      $region122: #{generator_block_forward.3} parent=5 // pred_fallthru
        _
    $region6: #{generator_block_forward.3} parent=1 // loop_footer
      %s14 = sadd.s32 1, %s10
    $region7: #{generator_block_forward.3} parent=1 // loop_footer_branch
      %9 = sbr.rel target = $region3
    $region8: #{generator_block_forward.3} parent=1 // loop_exit
      _

</llo_original>
